<compile_context>
chip_gen: v5e
topology: v5e:2x2
jax: 0.10.0
libtpu: 0.0.40
codegen_flags: <defaults>
</compile_context>

<pallas_src>
import functools

import jax
import jax.numpy as jnp
from jax.experimental import pallas as pl
from jax.experimental.pallas import tpu as pltpu

_HIGHEST = jax.lax.Precision.HIGHEST


def cnn_kernel(x_ref, w1_ref, b1_ref, w2_ref, b2_ref, sel_ref, o_ref, *, K):
    # x_ref:   (C, N*T)     channel-major input, batch concatenated along lanes
    # w1_ref:  (K, H, C)    conv1 per-tap weights
    # b1_ref:  (H, 1)
    # w2_ref:  (K, H, H)    conv2 per-tap weights
    # b2_ref:  (H, 1)
    # sel_ref: (N*T, N*Tp)  block-diagonal 0/1 maxpool-selection matrix
    # o_ref:   (H, N*Tp)    conv2 output slab (valid columns [n*Tp, n*Tp+T2))
    x = x_ref[...]                                              # (C, N*T)
    C, NT = x.shape

    def shift_left(a, k):
        # a[:, j] <- a[:, j+k]; zero-fill at the tail (tail columns are never
        # consumed: each batch segment's valid region ends K-1 before the seam).
        if k == 0:
            return a
        return jnp.concatenate(
            [a[:, k:], jnp.zeros((a.shape[0], k), a.dtype)], axis=1)

    # ---- conv1: K accumulating tap matmuls over the full batch slab ----
    y1 = jnp.dot(w1_ref[0], x,
                 preferred_element_type=jnp.float32, precision=_HIGHEST)
    for k in range(1, K):
        y1 = y1 + jnp.dot(w1_ref[k], shift_left(x, k),
                          preferred_element_type=jnp.float32,
                          precision=_HIGHEST)
    y1 = jnp.maximum(y1 + b1_ref[...], 0.0)                     # (H, N*T) ReLU
    H = y1.shape[0]

    # ---- MaxPool1d(K, stride=K), batched ----
    # Windowed max over K lane shifts (VPU), then ONE block-diagonal 0/1
    # selection matmul picks columns n*T + K*p for all batches at once.
    m = y1
    for k in range(1, K):
        m = jnp.maximum(m, shift_left(y1, k))                   # (H, N*T)
    pooled = jnp.dot(m, sel_ref[...],
                     preferred_element_type=jnp.float32,
                     precision=_HIGHEST)                        # (H, N*Tp)

    # ---- conv2: K accumulating tap matmuls on the pooled slab ----
    y2 = jnp.dot(w2_ref[0], pooled,
                 preferred_element_type=jnp.float32, precision=_HIGHEST)
    for k in range(1, K):
        y2 = y2 + jnp.dot(w2_ref[k], shift_left(pooled, k),
                          preferred_element_type=jnp.float32,
                          precision=_HIGHEST)
    y2 = y2 + b2_ref[...]                                       # (H, N*Tp)

    # Single lane-dense store of the whole slab.
    o_ref[...] = y2.astype(o_ref.dtype)


def cnn_forward_pallas(x_nct, w1_pt, b1, w2_pt, b2, kernel_size=5):
    """x_nct: (N, C, T) float32. Weights in PyTorch Conv1d layout (Cout, Cin, K)."""
    N, C, T = x_nct.shape
    K = kernel_size
    H = w1_pt.shape[0]
    T1 = T - K + 1               # conv1 output length
    Tp = T1 // K                 # maxpool output length (floor)
    T2 = Tp - K + 1              # conv2 output length
    assert T2 >= 1, "T too small for conv1 -> pool -> conv2"
    assert K * Tp <= T1          # pool windows stay inside each batch segment

    # Host-side prep is layout plumbing on tiny arrays only.
    x2d = jnp.transpose(x_nct, (1, 0, 2)).reshape(C, N * T).astype(jnp.float32)
    w1_taps = jnp.transpose(w1_pt, (2, 0, 1)).astype(jnp.float32)   # (K, H, C)
    w2_taps = jnp.transpose(w2_pt, (2, 0, 1)).astype(jnp.float32)   # (K, H, H)
    b1r = b1.reshape(H, 1).astype(jnp.float32)
    b2r = b2.reshape(H, 1).astype(jnp.float32)

    # Block-diagonal pool-selection: sel[n*T + K*p, n*Tp + p] = 1.
    rows = jnp.arange(N * T)
    cols = jnp.arange(N * Tp)
    sel = ((rows[:, None] // T == cols[None, :] // Tp)
           & (rows[:, None] % T == K * (cols[None, :] % Tp))
           ).astype(jnp.float32)                                     # (N*T, N*Tp)

    kernel = functools.partial(cnn_kernel, K=K)

    y2_slab = pl.pallas_call(
        kernel,
        out_shape=jax.ShapeDtypeStruct((H, N * Tp), jnp.float32),
        in_specs=[pl.BlockSpec(memory_space=pltpu.MemorySpace.VMEM)] * 6,
        out_specs=pl.BlockSpec(memory_space=pltpu.MemorySpace.VMEM),
    )(x2d, w1_taps, b1r, w2_taps, b2r, sel)

    # ~1 KB reshape back to PyTorch (N, H, T2) layout (wrapper-side layout only).
    return jnp.transpose(y2_slab.reshape(H, N, Tp)[:, :, :T2], (1, 0, 2))


def cnn_forward_ref(x_nct, w1_pt, b1, w2_pt, b2, kernel_size=5):
    """Pure-JAX reference mirroring PyTorch semantics (for verification)."""
    K = kernel_size

    def conv1d(x, w, b):
        N, Cin, T = x.shape
        Tout = T - K + 1
        out = jnp.zeros((N, w.shape[0], Tout), jnp.float32)
        for k in range(K):
            out = out + jnp.einsum('nct,oc->not', x[:, :, k:k + Tout], w[:, :, k])
        return out + b[None, :, None]

    y = jax.nn.relu(conv1d(x_nct, w1_pt, b1))
    Tp = y.shape[-1] // K
    y = y[:, :, :Tp * K].reshape(y.shape[0], y.shape[1], Tp, K).max(axis=-1)
    return conv1d(y, w2_pt, b2)


if __name__ == "__main__":
    # Module hyperparams: input_size=4, kernel_size=5, h_dim=12.
    N, C, T = 2, 4, 64
    K, H = 5, 12

    key = jax.random.PRNGKey(0)
    kx, kw1, kb1, kw2, kb2 = jax.random.split(key, 5)

    x = jax.random.normal(kx, (N, C, T), dtype=jnp.float32)
    # Deterministic synthetic parameters (PyTorch Conv1d weight layout: Cout,Cin,K).
    w1 = jax.random.normal(kw1, (H, C, K), dtype=jnp.float32) * 0.2
    b1 = jax.random.normal(kb1, (H,), dtype=jnp.float32) * 0.1
    w2 = jax.random.normal(kw2, (H, H, K), dtype=jnp.float32) * 0.2
    b2 = jax.random.normal(kb2, (H,), dtype=jnp.float32) * 0.1

    out = cnn_forward_pallas(x, w1, b1, w2, b2, kernel_size=K)
    out = jax.block_until_ready(out)

    ref = cnn_forward_ref(x, w1, b1, w2, b2, kernel_size=K)
    assert out.shape == ref.shape == (N, H, (T - K + 1) // K - K + 1)
    assert jnp.allclose(out, ref, rtol=1e-3, atol=1e-3), (
        float(jnp.max(jnp.abs(out - ref))))

    print("KERNEL_OK")
</pallas_src>

<mosaic_0001>
module attributes {stable_mosaic.version = 11 : i64} {
  func.func @cnn_kernel(%arg0: memref<4x128xf32, #tpu.memory_space<vmem>>, %arg1: memref<5x12x4xf32, #tpu.memory_space<vmem>>, %arg2: memref<12x1xf32, #tpu.memory_space<vmem>>, %arg3: memref<5x12x12xf32, #tpu.memory_space<vmem>>, %arg4: memref<12x1xf32, #tpu.memory_space<vmem>>, %arg5: memref<128x24xf32, #tpu.memory_space<vmem>>, %arg6: memref<12x24xf32, #tpu.memory_space<vmem>>) attributes {dimension_semantics = [], scalar_prefetch = 0 : i64, scratch_operands = 0 : i64, tpu.core_type = #tpu.core_type<tc>} {
    %c0 = arith.constant 0 : index
    %c0_0 = arith.constant 0 : index
    %0 = vector.load %arg0[%c0, %c0_0] : memref<4x128xf32, #tpu.memory_space<vmem>>, vector<4x128xf32>
    %c0_1 = arith.constant 0 : index
    %c0_2 = arith.constant 0 : index
    %c0_3 = arith.constant 0 : index
    %1 = vector.load %arg1[%c0_1, %c0_2, %c0_3] : memref<5x12x4xf32, #tpu.memory_space<vmem>>, vector<1x12x4xf32>
    %2 = vector.shape_cast %1 : vector<1x12x4xf32> to vector<12x4xf32>
    %cst = arith.constant dense<0.000000e+00> : vector<12x128xf32>
    %3 = tpu.matmul %2, %0, %cst {dimension_numbers = #tpu.dot_dimension_numbers<[1], [0], [0], [1], [0, 0, 1, 1], [], []>, precision = #tpu.contract_precision<fp32>} : vector<12x4xf32>, vector<4x128xf32>, vector<12x128xf32> -> vector<12x128xf32>
    %c1 = arith.constant 1 : index
    %c0_4 = arith.constant 0 : index
    %c0_5 = arith.constant 0 : index
    %4 = vector.load %arg1[%c1, %c0_4, %c0_5] : memref<5x12x4xf32, #tpu.memory_space<vmem>>, vector<1x12x4xf32>
    %5 = vector.shape_cast %4 : vector<1x12x4xf32> to vector<12x4xf32>
    %6 = vector.extract_strided_slice %0 {offsets = [0, 1], sizes = [4, 127], strides = [1, 1]} : vector<4x128xf32> to vector<4x127xf32>
    %cst_6 = arith.constant 0.000000e+00 : f32
    %7 = vector.broadcast %cst_6 : f32 to vector<4x1xf32>
    %8 = tpu.concatenate %6, %7 in 1 : vector<4x127xf32>, vector<4x1xf32> -> vector<4x128xf32>
    %cst_7 = arith.constant dense<0.000000e+00> : vector<12x128xf32>
    %9 = tpu.matmul %5, %8, %cst_7 {dimension_numbers = #tpu.dot_dimension_numbers<[1], [0], [0], [1], [0, 0, 1, 1], [], []>, precision = #tpu.contract_precision<fp32>} : vector<12x4xf32>, vector<4x128xf32>, vector<12x128xf32> -> vector<12x128xf32>
    %10 = arith.addf %3, %9 : vector<12x128xf32>
    %c2 = arith.constant 2 : index
    %c0_8 = arith.constant 0 : index
    %c0_9 = arith.constant 0 : index
    %11 = vector.load %arg1[%c2, %c0_8, %c0_9] : memref<5x12x4xf32, #tpu.memory_space<vmem>>, vector<1x12x4xf32>
    %12 = vector.shape_cast %11 : vector<1x12x4xf32> to vector<12x4xf32>
    %13 = vector.extract_strided_slice %0 {offsets = [0, 2], sizes = [4, 126], strides = [1, 1]} : vector<4x128xf32> to vector<4x126xf32>
    %cst_10 = arith.constant 0.000000e+00 : f32
    %14 = vector.broadcast %cst_10 : f32 to vector<4x2xf32>
    %15 = tpu.concatenate %13, %14 in 1 : vector<4x126xf32>, vector<4x2xf32> -> vector<4x128xf32>
    %cst_11 = arith.constant dense<0.000000e+00> : vector<12x128xf32>
    %16 = tpu.matmul %12, %15, %cst_11 {dimension_numbers = #tpu.dot_dimension_numbers<[1], [0], [0], [1], [0, 0, 1, 1], [], []>, precision = #tpu.contract_precision<fp32>} : vector<12x4xf32>, vector<4x128xf32>, vector<12x128xf32> -> vector<12x128xf32>
    %17 = arith.addf %10, %16 : vector<12x128xf32>
    %c3 = arith.constant 3 : index
    %c0_12 = arith.constant 0 : index
    %c0_13 = arith.constant 0 : index
    %18 = vector.load %arg1[%c3, %c0_12, %c0_13] : memref<5x12x4xf32, #tpu.memory_space<vmem>>, vector<1x12x4xf32>
    %19 = vector.shape_cast %18 : vector<1x12x4xf32> to vector<12x4xf32>
    %20 = vector.extract_strided_slice %0 {offsets = [0, 3], sizes = [4, 125], strides = [1, 1]} : vector<4x128xf32> to vector<4x125xf32>
    %cst_14 = arith.constant 0.000000e+00 : f32
    %21 = vector.broadcast %cst_14 : f32 to vector<4x3xf32>
    %22 = tpu.concatenate %20, %21 in 1 : vector<4x125xf32>, vector<4x3xf32> -> vector<4x128xf32>
    %cst_15 = arith.constant dense<0.000000e+00> : vector<12x128xf32>
    %23 = tpu.matmul %19, %22, %cst_15 {dimension_numbers = #tpu.dot_dimension_numbers<[1], [0], [0], [1], [0, 0, 1, 1], [], []>, precision = #tpu.contract_precision<fp32>} : vector<12x4xf32>, vector<4x128xf32>, vector<12x128xf32> -> vector<12x128xf32>
    %24 = arith.addf %17, %23 : vector<12x128xf32>
    %c4 = arith.constant 4 : index
    %c0_16 = arith.constant 0 : index
    %c0_17 = arith.constant 0 : index
    %25 = vector.load %arg1[%c4, %c0_16, %c0_17] : memref<5x12x4xf32, #tpu.memory_space<vmem>>, vector<1x12x4xf32>
    %26 = vector.shape_cast %25 : vector<1x12x4xf32> to vector<12x4xf32>
    %27 = vector.extract_strided_slice %0 {offsets = [0, 4], sizes = [4, 124], strides = [1, 1]} : vector<4x128xf32> to vector<4x124xf32>
    %cst_18 = arith.constant 0.000000e+00 : f32
    %28 = vector.broadcast %cst_18 : f32 to vector<4x4xf32>
    %29 = tpu.concatenate %27, %28 in 1 : vector<4x124xf32>, vector<4x4xf32> -> vector<4x128xf32>
    %cst_19 = arith.constant dense<0.000000e+00> : vector<12x128xf32>
    %30 = tpu.matmul %26, %29, %cst_19 {dimension_numbers = #tpu.dot_dimension_numbers<[1], [0], [0], [1], [0, 0, 1, 1], [], []>, precision = #tpu.contract_precision<fp32>} : vector<12x4xf32>, vector<4x128xf32>, vector<12x128xf32> -> vector<12x128xf32>
    %31 = arith.addf %24, %30 : vector<12x128xf32>
    %c0_20 = arith.constant 0 : index
    %c0_21 = arith.constant 0 : index
    %32 = vector.load %arg2[%c0_20, %c0_21] : memref<12x1xf32, #tpu.memory_space<vmem>>, vector<12x1xf32>
    %33 = vector.broadcast %32 : vector<12x1xf32> to vector<12x128xf32>
    %34 = arith.addf %31, %33 : vector<12x128xf32>
    %cst_22 = arith.constant 0.000000e+00 : f32
    %35 = vector.broadcast %cst_22 : f32 to vector<12x128xf32>
    %36 = arith.maximumf %34, %35 : vector<12x128xf32>
    %37 = vector.extract_strided_slice %36 {offsets = [0, 1], sizes = [12, 127], strides = [1, 1]} : vector<12x128xf32> to vector<12x127xf32>
    %cst_23 = arith.constant 0.000000e+00 : f32
    %38 = vector.broadcast %cst_23 : f32 to vector<12x1xf32>
    %39 = tpu.concatenate %37, %38 in 1 : vector<12x127xf32>, vector<12x1xf32> -> vector<12x128xf32>
    %40 = arith.maximumf %36, %39 : vector<12x128xf32>
    %41 = vector.extract_strided_slice %36 {offsets = [0, 2], sizes = [12, 126], strides = [1, 1]} : vector<12x128xf32> to vector<12x126xf32>
    %cst_24 = arith.constant 0.000000e+00 : f32
    %42 = vector.broadcast %cst_24 : f32 to vector<12x2xf32>
    %43 = tpu.concatenate %41, %42 in 1 : vector<12x126xf32>, vector<12x2xf32> -> vector<12x128xf32>
    %44 = arith.maximumf %40, %43 : vector<12x128xf32>
    %45 = vector.extract_strided_slice %36 {offsets = [0, 3], sizes = [12, 125], strides = [1, 1]} : vector<12x128xf32> to vector<12x125xf32>
    %cst_25 = arith.constant 0.000000e+00 : f32
    %46 = vector.broadcast %cst_25 : f32 to vector<12x3xf32>
    %47 = tpu.concatenate %45, %46 in 1 : vector<12x125xf32>, vector<12x3xf32> -> vector<12x128xf32>
    %48 = arith.maximumf %44, %47 : vector<12x128xf32>
    %49 = vector.extract_strided_slice %36 {offsets = [0, 4], sizes = [12, 124], strides = [1, 1]} : vector<12x128xf32> to vector<12x124xf32>
    %cst_26 = arith.constant 0.000000e+00 : f32
    %50 = vector.broadcast %cst_26 : f32 to vector<12x4xf32>
    %51 = tpu.concatenate %49, %50 in 1 : vector<12x124xf32>, vector<12x4xf32> -> vector<12x128xf32>
    %52 = arith.maximumf %48, %51 : vector<12x128xf32>
    %c0_27 = arith.constant 0 : index
    %c0_28 = arith.constant 0 : index
    %53 = vector.load %arg5[%c0_27, %c0_28] : memref<128x24xf32, #tpu.memory_space<vmem>>, vector<128x24xf32>
    %cst_29 = arith.constant dense<0.000000e+00> : vector<12x24xf32>
    %54 = tpu.matmul %52, %53, %cst_29 {dimension_numbers = #tpu.dot_dimension_numbers<[1], [0], [0], [1], [0, 0, 1, 1], [], []>, precision = #tpu.contract_precision<fp32>} : vector<12x128xf32>, vector<128x24xf32>, vector<12x24xf32> -> vector<12x24xf32>
    %c0_30 = arith.constant 0 : index
    %c0_31 = arith.constant 0 : index
    %c0_32 = arith.constant 0 : index
    %55 = vector.load %arg3[%c0_30, %c0_31, %c0_32] : memref<5x12x12xf32, #tpu.memory_space<vmem>>, vector<1x12x12xf32>
    %56 = vector.shape_cast %55 : vector<1x12x12xf32> to vector<12x12xf32>
    %cst_33 = arith.constant dense<0.000000e+00> : vector<12x24xf32>
    %57 = tpu.matmul %56, %54, %cst_33 {dimension_numbers = #tpu.dot_dimension_numbers<[1], [0], [0], [1], [0, 0, 1, 1], [], []>, precision = #tpu.contract_precision<fp32>} : vector<12x12xf32>, vector<12x24xf32>, vector<12x24xf32> -> vector<12x24xf32>
    %c1_34 = arith.constant 1 : index
    %c0_35 = arith.constant 0 : index
    %c0_36 = arith.constant 0 : index
    %58 = vector.load %arg3[%c1_34, %c0_35, %c0_36] : memref<5x12x12xf32, #tpu.memory_space<vmem>>, vector<1x12x12xf32>
    %59 = vector.shape_cast %58 : vector<1x12x12xf32> to vector<12x12xf32>
    %60 = vector.extract_strided_slice %54 {offsets = [0, 1], sizes = [12, 23], strides = [1, 1]} : vector<12x24xf32> to vector<12x23xf32>
    %cst_37 = arith.constant 0.000000e+00 : f32
    %61 = vector.broadcast %cst_37 : f32 to vector<12x1xf32>
    %62 = tpu.concatenate %60, %61 in 1 : vector<12x23xf32>, vector<12x1xf32> -> vector<12x24xf32>
    %cst_38 = arith.constant dense<0.000000e+00> : vector<12x24xf32>
    %63 = tpu.matmul %59, %62, %cst_38 {dimension_numbers = #tpu.dot_dimension_numbers<[1], [0], [0], [1], [0, 0, 1, 1], [], []>, precision = #tpu.contract_precision<fp32>} : vector<12x12xf32>, vector<12x24xf32>, vector<12x24xf32> -> vector<12x24xf32>
    %64 = arith.addf %57, %63 : vector<12x24xf32>
    %c2_39 = arith.constant 2 : index
    %c0_40 = arith.constant 0 : index
    %c0_41 = arith.constant 0 : index
    %65 = vector.load %arg3[%c2_39, %c0_40, %c0_41] : memref<5x12x12xf32, #tpu.memory_space<vmem>>, vector<1x12x12xf32>
    %66 = vector.shape_cast %65 : vector<1x12x12xf32> to vector<12x12xf32>
    %67 = vector.extract_strided_slice %54 {offsets = [0, 2], sizes = [12, 22], strides = [1, 1]} : vector<12x24xf32> to vector<12x22xf32>
    %cst_42 = arith.constant 0.000000e+00 : f32
    %68 = vector.broadcast %cst_42 : f32 to vector<12x2xf32>
    %69 = tpu.concatenate %67, %68 in 1 : vector<12x22xf32>, vector<12x2xf32> -> vector<12x24xf32>
    %cst_43 = arith.constant dense<0.000000e+00> : vector<12x24xf32>
    %70 = tpu.matmul %66, %69, %cst_43 {dimension_numbers = #tpu.dot_dimension_numbers<[1], [0], [0], [1], [0, 0, 1, 1], [], []>, precision = #tpu.contract_precision<fp32>} : vector<12x12xf32>, vector<12x24xf32>, vector<12x24xf32> -> vector<12x24xf32>
    %71 = arith.addf %64, %70 : vector<12x24xf32>
    %c3_44 = arith.constant 3 : index
    %c0_45 = arith.constant 0 : index
    %c0_46 = arith.constant 0 : index
    %72 = vector.load %arg3[%c3_44, %c0_45, %c0_46] : memref<5x12x12xf32, #tpu.memory_space<vmem>>, vector<1x12x12xf32>
    %73 = vector.shape_cast %72 : vector<1x12x12xf32> to vector<12x12xf32>
    %74 = vector.extract_strided_slice %54 {offsets = [0, 3], sizes = [12, 21], strides = [1, 1]} : vector<12x24xf32> to vector<12x21xf32>
    %cst_47 = arith.constant 0.000000e+00 : f32
    %75 = vector.broadcast %cst_47 : f32 to vector<12x3xf32>
    %76 = tpu.concatenate %74, %75 in 1 : vector<12x21xf32>, vector<12x3xf32> -> vector<12x24xf32>
    %cst_48 = arith.constant dense<0.000000e+00> : vector<12x24xf32>
    %77 = tpu.matmul %73, %76, %cst_48 {dimension_numbers = #tpu.dot_dimension_numbers<[1], [0], [0], [1], [0, 0, 1, 1], [], []>, precision = #tpu.contract_precision<fp32>} : vector<12x12xf32>, vector<12x24xf32>, vector<12x24xf32> -> vector<12x24xf32>
    %78 = arith.addf %71, %77 : vector<12x24xf32>
    %c4_49 = arith.constant 4 : index
    %c0_50 = arith.constant 0 : index
    %c0_51 = arith.constant 0 : index
    %79 = vector.load %arg3[%c4_49, %c0_50, %c0_51] : memref<5x12x12xf32, #tpu.memory_space<vmem>>, vector<1x12x12xf32>
    %80 = vector.shape_cast %79 : vector<1x12x12xf32> to vector<12x12xf32>
    %81 = vector.extract_strided_slice %54 {offsets = [0, 4], sizes = [12, 20], strides = [1, 1]} : vector<12x24xf32> to vector<12x20xf32>
    %cst_52 = arith.constant 0.000000e+00 : f32
    %82 = vector.broadcast %cst_52 : f32 to vector<12x4xf32>
    %83 = tpu.concatenate %81, %82 in 1 : vector<12x20xf32>, vector<12x4xf32> -> vector<12x24xf32>
    %cst_53 = arith.constant dense<0.000000e+00> : vector<12x24xf32>
    %84 = tpu.matmul %80, %83, %cst_53 {dimension_numbers = #tpu.dot_dimension_numbers<[1], [0], [0], [1], [0, 0, 1, 1], [], []>, precision = #tpu.contract_precision<fp32>} : vector<12x12xf32>, vector<12x24xf32>, vector<12x24xf32> -> vector<12x24xf32>
    %85 = arith.addf %78, %84 : vector<12x24xf32>
    %c0_54 = arith.constant 0 : index
    %c0_55 = arith.constant 0 : index
    %86 = vector.load %arg4[%c0_54, %c0_55] : memref<12x1xf32, #tpu.memory_space<vmem>>, vector<12x1xf32>
    %87 = vector.broadcast %86 : vector<12x1xf32> to vector<12x24xf32>
    %88 = arith.addf %85, %87 : vector<12x24xf32>
    %c0_56 = arith.constant 0 : index
    %c0_57 = arith.constant 0 : index
    %89 = vector.load %arg6[%c0_56, %c0_57] : memref<12x24xf32, #tpu.memory_space<vmem>>, vector<12x24xf32>
    tpu.vector_store %arg6[%c0_56, %c0_57], %88 {strides = array<i32>} : memref<12x24xf32, #tpu.memory_space<vmem>>, vector<12x24xf32>,
    return
  }
}

</mosaic_0001>

<llo_original>
// kernel: tpu_custom_call.1
$region0: #{tpu_custom_call.1}
  #allocation0 [shape = 'u32[]', space=smem, size = 0x4, offset = 0x4, fixed_abs, tag = 'smem constant byte address 0x4 - core index']
  #allocation1 [shape = 'u32[72,128]{1,0:T(1,128)}', space=vmem, size = 0x9000, scoped, tag = 'internal scratch']
  %s0 = inlined_call_operand.vmem [shape: f32[4,128], index: 0, kind: input, shape index: {}]
  %s1 = inlined_call_operand.vmem [shape: f32[5,12,4], index: 1, kind: input, shape index: {}]
  %s2 = inlined_call_operand.vmem [shape: f32[12,1], index: 2, kind: input, shape index: {}]
  %s3 = inlined_call_operand.vmem [shape: f32[5,12,12], index: 3, kind: input, shape index: {}]
  %s4 = inlined_call_operand.vmem [shape: f32[12,1], index: 4, kind: input, shape index: {}]
  %s5 = inlined_call_operand.vmem [shape: f32[128,24], index: 5, kind: input, shape index: {}]
  %s6 = inlined_call_operand.hbm [shape: f32[12,24], index: 6, kind: output, shape index: {}]
  %s7 = sld [smem:[#allocation0]]
  $region34: #{tpu_custom_call.1} parent=0
    _
  %s9 = ssub.s32 1, %s7
  %s10 = scalar_select 0, %s9, %s7
  $region1: #{tpu_custom_call.1} parent=0
    #allocation2 [shape = 'u8[8192]{0}', space=vmem, size = 0x2000, scoped, tag = 'output window, operand 0, single buffered']
    #allocation3 [shape = 's32[1]{0}', space=sflag, size = 0x4, scoped, tag = 'scoped memory for tpu_custom_call.1']
    %11 = vsyncpa [#allocation3], 0
    // Predicated region
    $region2: #{tpu_custom_call.1} parent=1 // pred_check
      _
    $region3: #{tpu_custom_call.1} parent=1 // pred_check_branch
      %13 = sbr.rel (0) target = $region5
    $region4: #{tpu_custom_call.1} parent=1 // pred_region
      _
    $region5: #{tpu_custom_call.1} parent=1 // pred_fallthru
      _
    // Predicated region
    $region6: #{tpu_custom_call.1} parent=1 // pred_check
      _
    $region7: #{tpu_custom_call.1} parent=1 // pred_check_branch
      %15 = sbr.rel (0) target = $region9
    $region8: #{tpu_custom_call.1} parent=1 // pred_region
      _
    $region9: #{tpu_custom_call.1} parent=1 // pred_fallthru
      _
    // Predicated region
    $region10: #{tpu_custom_call.1} parent=1 // pred_check
      _
    $region11: #{tpu_custom_call.1} parent=1 // pred_check_branch
      %17 = sbr.rel (0) target = $region13
    $region12: #{tpu_custom_call.1} parent=1 // pred_region
      _
    $region13: #{tpu_custom_call.1} parent=1 // pred_fallthru
      _
    // Predicated region
    $region14: #{tpu_custom_call.1} parent=1 // pred_check
      _
    $region15: #{tpu_custom_call.1} parent=1 // pred_check_branch
      %19 = sbr.rel (0) target = $region17
    $region16: #{tpu_custom_call.1} parent=1 // pred_region
      _
    $region17: #{tpu_custom_call.1} parent=1 // pred_fallthru
      _
    // Predicated region
    $region18: #{tpu_custom_call.1} parent=1 // pred_check
      _
    $region19: #{tpu_custom_call.1} parent=1 // pred_check_branch
      %21 = sbr.rel (0) target = $region21
    $region20: #{tpu_custom_call.1} parent=1 // pred_region
      _
    $region21: #{tpu_custom_call.1} parent=1 // pred_fallthru
      _
    // Predicated region
    $region22: #{tpu_custom_call.1} parent=1 // pred_check
      _
    $region23: #{tpu_custom_call.1} parent=1 // pred_check_branch
      %23 = sbr.rel (0) target = $region25
    $region24: #{tpu_custom_call.1} parent=1 // pred_region
      _
    $region25: #{tpu_custom_call.1} parent=1 // pred_fallthru
      _
    %v24 = vld [vmem:[%s0] sm:$0xf]
    %v25 = vld [vmem:[%s1] sm:$0xff]
    %v26 = vld [vmem:[%s1 + $0x8] sm:$0xf]
    %s27 = scalar_lea.vmem %s1, 16
    %v28 = vld [vmem:[%s27] sm:$0xff]
    %v29 = vld [vmem:[%s27 + $0x8] sm:$0xf]
    %31 = vrot.lane.b32.xlu0 %v24, 127
    %v32 = vpop.permute.xlu0 %31
    %vm34 = vcmask 1039360
    %v35 = vsel %vm34, %v32, 0.0
    %vm36 = vcmask 31744
    %v38 = vsel %vm36, %v28, 0
    %v41 = vsel %vm36, %v29, 0
    %vm43 = vcmask 1043456
    %v45 = vsel %vm43, %v35, 0
    %47 = vmatpush.msra.mxu0 0.0
    %48 = vmatpush.msra.mxu0 0.0
    %49 = vmatpush.msra.mxu0 0.0
    %50 = vmatpush.msra.mxu0 0.0
    %51 = vmatpush.msra.mxu0 0.0
    %52 = vmatpush.msra.mxu0 0.0
    %53 = vmatpush.msra.mxu0 0.0
    %54 = vmatpush.msra.mxu0 0.0
    %55 = vmatpush.msra.mxu0 0.0
    %56 = vmatpush.msra.mxu0 0.0
    %57 = vmatpush.msra.mxu0 0.0
    %58 = vmatpush.msra.mxu0 0.0
    %59 = vmatpush.msra.mxu0 0.0
    %60 = vmatpush.msra.mxu0 0.0
    %61 = vmatpush.msra.mxu0 0.0
    %v62 = vand.u32 %v45, 4294901760
    %63 = vmatpush.msra.mxu0 %v62
    %v64 = vand.u32 %v38, 4294901760
    %v65 = vsub.f32 %v38, %v64
    %v66 = vand.u32 %v65, 4294901760
    %v67 = vsub.f32 %v65, %v66
    %v68 = vand.u32 %v67, 4294901760
    %69 = vmatmul.f32.gmra.mxu0 %v68
    %v70 = vpop.f32.mrf.mxu0
    %v71 = vadd.f32 0.0, %v70
    %v72 = vand.u32 %v41, 4294901760
    %v73 = vsub.f32 %v41, %v72
    %v74 = vand.u32 %v73, 4294901760
    %v75 = vsub.f32 %v73, %v74
    %v76 = vand.u32 %v75, 4294901760
    %77 = vmatmul.f32.gmra.mxu0 %v76
    %v78 = vpop.f32.mrf.mxu0
    %v79 = vadd.f32 0.0, %v78
    %80 = vdwg.mxu0
    %81 = vmatpush.msra.mxu0 0.0
    %82 = vmatpush.msra.mxu0 0.0
    %83 = vmatpush.msra.mxu0 0.0
    %84 = vmatpush.msra.mxu0 0.0
    %85 = vmatpush.msra.mxu0 0.0
    %86 = vmatpush.msra.mxu0 0.0
    %87 = vmatpush.msra.mxu0 0.0
    %88 = vmatpush.msra.mxu0 0.0
    %89 = vmatpush.msra.mxu0 0.0
    %90 = vmatpush.msra.mxu0 0.0
    %91 = vmatpush.msra.mxu0 0.0
    %92 = vmatpush.msra.mxu0 0.0
    %93 = vmatpush.msra.mxu0 0.0
    %94 = vmatpush.msra.mxu0 0.0
    %95 = vmatpush.msra.mxu0 0.0
    %v96 = vand.u32 %v45, 4294901760
    %v97 = vsub.f32 %v45, %v96
    %v98 = vand.u32 %v97, 4294901760
    %v99 = vsub.f32 %v97, %v98
    %v100 = vand.u32 %v99, 4294901760
    %101 = vmatpush.msra.mxu0 %v100
    %v102 = vand.u32 %v38, 4294901760
    %103 = vmatmul.f32.gmra.mxu0 %v102
    %v104 = vpop.f32.mrf.mxu0
    %v105 = vadd.f32 %v71, %v104
    %v106 = vand.u32 %v41, 4294901760
    %107 = vmatmul.f32.gmra.mxu0 %v106
    %v108 = vpop.f32.mrf.mxu0
    %v109 = vadd.f32 %v79, %v108
    %110 = vdwg.mxu0
    %111 = vmatpush.msra.mxu0 0.0
    %112 = vmatpush.msra.mxu0 0.0
    %113 = vmatpush.msra.mxu0 0.0
    %114 = vmatpush.msra.mxu0 0.0
    %115 = vmatpush.msra.mxu0 0.0
    %116 = vmatpush.msra.mxu0 0.0
    %117 = vmatpush.msra.mxu0 0.0
    %118 = vmatpush.msra.mxu0 0.0
    %119 = vmatpush.msra.mxu0 0.0
    %120 = vmatpush.msra.mxu0 0.0
    %121 = vmatpush.msra.mxu0 0.0
    %122 = vmatpush.msra.mxu0 0.0
    %123 = vmatpush.msra.mxu0 0.0
    %124 = vmatpush.msra.mxu0 0.0
    %125 = vmatpush.msra.mxu0 0.0
    %v126 = vand.u32 %v45, 4294901760
    %v127 = vsub.f32 %v45, %v126
    %128 = vmatpush.msra.mxu0 %v127
    %v129 = vand.u32 %v38, 4294901760
    %v130 = vsub.f32 %v38, %v129
    %131 = vmatmul.f32.gmra.mxu0 %v130
    %v132 = vpop.f32.mrf.mxu0
    %v133 = vadd.f32 %v105, %v132
    %v134 = vand.u32 %v41, 4294901760
    %v135 = vsub.f32 %v41, %v134
    %136 = vmatmul.f32.gmra.mxu0 %v135
    %v137 = vpop.f32.mrf.mxu0
    %v138 = vadd.f32 %v109, %v137
    %139 = vdwg.mxu0
    %140 = vmatpush.msra.mxu0 0.0
    %141 = vmatpush.msra.mxu0 0.0
    %142 = vmatpush.msra.mxu0 0.0
    %143 = vmatpush.msra.mxu0 0.0
    %144 = vmatpush.msra.mxu0 0.0
    %145 = vmatpush.msra.mxu0 0.0
    %146 = vmatpush.msra.mxu0 0.0
    %147 = vmatpush.msra.mxu0 0.0
    %148 = vmatpush.msra.mxu0 0.0
    %149 = vmatpush.msra.mxu0 0.0
    %150 = vmatpush.msra.mxu0 0.0
    %151 = vmatpush.msra.mxu0 0.0
    %152 = vmatpush.msra.mxu0 0.0
    %153 = vmatpush.msra.mxu0 0.0
    %154 = vmatpush.msra.mxu0 0.0
    %v155 = vand.u32 %v45, 4294901760
    %156 = vmatpush.msra.mxu0 %v155
    %v157 = vand.u32 %v38, 4294901760
    %v158 = vsub.f32 %v38, %v157
    %v159 = vand.u32 %v158, 4294901760
    %160 = vmatmul.f32.gmra.mxu0 %v159
    %v161 = vpop.f32.mrf.mxu0
    %v162 = vadd.f32 %v133, %v161
    %v163 = vand.u32 %v41, 4294901760
    %v164 = vsub.f32 %v41, %v163
    %v165 = vand.u32 %v164, 4294901760
    %166 = vmatmul.f32.gmra.mxu0 %v165
    %v167 = vpop.f32.mrf.mxu0
    %v168 = vadd.f32 %v138, %v167
    %169 = vdwg.mxu0
    %170 = vmatpush.msra.mxu0 0.0
    %171 = vmatpush.msra.mxu0 0.0
    %172 = vmatpush.msra.mxu0 0.0
    %173 = vmatpush.msra.mxu0 0.0
    %174 = vmatpush.msra.mxu0 0.0
    %175 = vmatpush.msra.mxu0 0.0
    %176 = vmatpush.msra.mxu0 0.0
    %177 = vmatpush.msra.mxu0 0.0
    %178 = vmatpush.msra.mxu0 0.0
    %179 = vmatpush.msra.mxu0 0.0
    %180 = vmatpush.msra.mxu0 0.0
    %181 = vmatpush.msra.mxu0 0.0
    %182 = vmatpush.msra.mxu0 0.0
    %183 = vmatpush.msra.mxu0 0.0
    %184 = vmatpush.msra.mxu0 0.0
    %v185 = vand.u32 %v45, 4294901760
    %v186 = vsub.f32 %v45, %v185
    %v187 = vand.u32 %v186, 4294901760
    %188 = vmatpush.msra.mxu0 %v187
    %v189 = vand.u32 %v38, 4294901760
    %190 = vmatmul.f32.gmra.mxu0 %v189
    %v191 = vpop.f32.mrf.mxu0
    %v192 = vadd.f32 %v162, %v191
    %v193 = vand.u32 %v41, 4294901760
    %194 = vmatmul.f32.gmra.mxu0 %v193
    %v195 = vpop.f32.mrf.mxu0
    %v196 = vadd.f32 %v168, %v195
    %197 = vdwg.mxu0
    %198 = vmatpush.msra.mxu0 0.0
    %199 = vmatpush.msra.mxu0 0.0
    %200 = vmatpush.msra.mxu0 0.0
    %201 = vmatpush.msra.mxu0 0.0
    %202 = vmatpush.msra.mxu0 0.0
    %203 = vmatpush.msra.mxu0 0.0
    %204 = vmatpush.msra.mxu0 0.0
    %205 = vmatpush.msra.mxu0 0.0
    %206 = vmatpush.msra.mxu0 0.0
    %207 = vmatpush.msra.mxu0 0.0
    %208 = vmatpush.msra.mxu0 0.0
    %209 = vmatpush.msra.mxu0 0.0
    %210 = vmatpush.msra.mxu0 0.0
    %211 = vmatpush.msra.mxu0 0.0
    %212 = vmatpush.msra.mxu0 0.0
    %v213 = vand.u32 %v45, 4294901760
    %214 = vmatpush.msra.mxu0 %v213
    %v215 = vand.u32 %v38, 4294901760
    %216 = vmatmul.f32.gmra.mxu0 %v215
    %v217 = vpop.f32.mrf.mxu0
    %v218 = vadd.f32 %v192, %v217
    %v219 = vand.u32 %v41, 4294901760
    %220 = vmatmul.f32.gmra.mxu0 %v219
    %v221 = vpop.f32.mrf.mxu0
    %v222 = vadd.f32 %v196, %v221
    %223 = vdwg.mxu0
    %v225 = vsel %vm36, %v25, 0
    %v228 = vsel %vm36, %v26, 0
    %v230 = vsel %vm43, %v24, 0
    %232 = vmatpush.msra.mxu0 0.0
    %233 = vmatpush.msra.mxu0 0.0
    %234 = vmatpush.msra.mxu0 0.0
    %235 = vmatpush.msra.mxu0 0.0
    %236 = vmatpush.msra.mxu0 0.0
    %237 = vmatpush.msra.mxu0 0.0
    %238 = vmatpush.msra.mxu0 0.0
    %239 = vmatpush.msra.mxu0 0.0
    %240 = vmatpush.msra.mxu0 0.0
    %241 = vmatpush.msra.mxu0 0.0
    %242 = vmatpush.msra.mxu0 0.0
    %243 = vmatpush.msra.mxu0 0.0
    %244 = vmatpush.msra.mxu0 0.0
    %245 = vmatpush.msra.mxu0 0.0
    %246 = vmatpush.msra.mxu0 0.0
    %v247 = vand.u32 %v230, 4294901760
    %248 = vmatpush.msra.mxu0 %v247
    %v249 = vand.u32 %v225, 4294901760
    %v250 = vsub.f32 %v225, %v249
    %v251 = vand.u32 %v250, 4294901760
    %v252 = vsub.f32 %v250, %v251
    %v253 = vand.u32 %v252, 4294901760
    %254 = vmatmul.f32.gmra.mxu0 %v253
    %v255 = vpop.f32.mrf.mxu0
    %v256 = vadd.f32 %v218, %v255
    %v257 = vand.u32 %v228, 4294901760
    %v258 = vsub.f32 %v228, %v257
    %v259 = vand.u32 %v258, 4294901760
    %v260 = vsub.f32 %v258, %v259
    %v261 = vand.u32 %v260, 4294901760
    %262 = vmatmul.f32.gmra.mxu0 %v261
    %v263 = vpop.f32.mrf.mxu0
    %v264 = vadd.f32 %v222, %v263
    %265 = vdwg.mxu0
    %266 = vmatpush.msra.mxu0 0.0
    %267 = vmatpush.msra.mxu0 0.0
    %268 = vmatpush.msra.mxu0 0.0
    %269 = vmatpush.msra.mxu0 0.0
    %270 = vmatpush.msra.mxu0 0.0
    %271 = vmatpush.msra.mxu0 0.0
    %272 = vmatpush.msra.mxu0 0.0
    %273 = vmatpush.msra.mxu0 0.0
    %274 = vmatpush.msra.mxu0 0.0
    %275 = vmatpush.msra.mxu0 0.0
    %276 = vmatpush.msra.mxu0 0.0
    %277 = vmatpush.msra.mxu0 0.0
    %278 = vmatpush.msra.mxu0 0.0
    %279 = vmatpush.msra.mxu0 0.0
    %280 = vmatpush.msra.mxu0 0.0
    %v281 = vand.u32 %v230, 4294901760
    %v282 = vsub.f32 %v230, %v281
    %v283 = vand.u32 %v282, 4294901760
    %v284 = vsub.f32 %v282, %v283
    %v285 = vand.u32 %v284, 4294901760
    %286 = vmatpush.msra.mxu0 %v285
    %v287 = vand.u32 %v225, 4294901760
    %288 = vmatmul.f32.gmra.mxu0 %v287
    %v289 = vpop.f32.mrf.mxu0
    %v290 = vadd.f32 %v256, %v289
    %v291 = vand.u32 %v228, 4294901760
    %292 = vmatmul.f32.gmra.mxu0 %v291
    %v293 = vpop.f32.mrf.mxu0
    %v294 = vadd.f32 %v264, %v293
    %295 = vdwg.mxu0
    %296 = vmatpush.msra.mxu0 0.0
    %297 = vmatpush.msra.mxu0 0.0
    %298 = vmatpush.msra.mxu0 0.0
    %299 = vmatpush.msra.mxu0 0.0
    %300 = vmatpush.msra.mxu0 0.0
    %301 = vmatpush.msra.mxu0 0.0
    %302 = vmatpush.msra.mxu0 0.0
    %303 = vmatpush.msra.mxu0 0.0
    %304 = vmatpush.msra.mxu0 0.0
    %305 = vmatpush.msra.mxu0 0.0
    %306 = vmatpush.msra.mxu0 0.0
    %307 = vmatpush.msra.mxu0 0.0
    %308 = vmatpush.msra.mxu0 0.0
    %309 = vmatpush.msra.mxu0 0.0
    %310 = vmatpush.msra.mxu0 0.0
    %v311 = vand.u32 %v230, 4294901760
    %v312 = vsub.f32 %v230, %v311
    %313 = vmatpush.msra.mxu0 %v312
    %v314 = vand.u32 %v225, 4294901760
    %v315 = vsub.f32 %v225, %v314
    %316 = vmatmul.f32.gmra.mxu0 %v315
    %v317 = vpop.f32.mrf.mxu0
    %v318 = vadd.f32 %v290, %v317
    %v319 = vand.u32 %v228, 4294901760
    %v320 = vsub.f32 %v228, %v319
    %321 = vmatmul.f32.gmra.mxu0 %v320
    %v322 = vpop.f32.mrf.mxu0
    %v323 = vadd.f32 %v294, %v322
    %324 = vdwg.mxu0
    %325 = vmatpush.msra.mxu0 0.0
    %326 = vmatpush.msra.mxu0 0.0
    %327 = vmatpush.msra.mxu0 0.0
    %328 = vmatpush.msra.mxu0 0.0
    %329 = vmatpush.msra.mxu0 0.0
    %330 = vmatpush.msra.mxu0 0.0
    %331 = vmatpush.msra.mxu0 0.0
    %332 = vmatpush.msra.mxu0 0.0
    %333 = vmatpush.msra.mxu0 0.0
    %334 = vmatpush.msra.mxu0 0.0
    %335 = vmatpush.msra.mxu0 0.0
    %336 = vmatpush.msra.mxu0 0.0
    %337 = vmatpush.msra.mxu0 0.0
    %338 = vmatpush.msra.mxu0 0.0
    %339 = vmatpush.msra.mxu0 0.0
    %v340 = vand.u32 %v230, 4294901760
    %341 = vmatpush.msra.mxu0 %v340
    %v342 = vand.u32 %v225, 4294901760
    %v343 = vsub.f32 %v225, %v342
    %v344 = vand.u32 %v343, 4294901760
    %345 = vmatmul.f32.gmra.mxu0 %v344
    %v346 = vpop.f32.mrf.mxu0
    %v347 = vadd.f32 %v318, %v346
    %v348 = vand.u32 %v228, 4294901760
    %v349 = vsub.f32 %v228, %v348
    %v350 = vand.u32 %v349, 4294901760
    %351 = vmatmul.f32.gmra.mxu0 %v350
    %v352 = vpop.f32.mrf.mxu0
    %v353 = vadd.f32 %v323, %v352
    %354 = vdwg.mxu0
    %355 = vmatpush.msra.mxu0 0.0
    %356 = vmatpush.msra.mxu0 0.0
    %357 = vmatpush.msra.mxu0 0.0
    %358 = vmatpush.msra.mxu0 0.0
    %359 = vmatpush.msra.mxu0 0.0
    %360 = vmatpush.msra.mxu0 0.0
    %361 = vmatpush.msra.mxu0 0.0
    %362 = vmatpush.msra.mxu0 0.0
    %363 = vmatpush.msra.mxu0 0.0
    %364 = vmatpush.msra.mxu0 0.0
    %365 = vmatpush.msra.mxu0 0.0
    %366 = vmatpush.msra.mxu0 0.0
    %367 = vmatpush.msra.mxu0 0.0
    %368 = vmatpush.msra.mxu0 0.0
    %369 = vmatpush.msra.mxu0 0.0
    %v370 = vand.u32 %v230, 4294901760
    %v371 = vsub.f32 %v230, %v370
    %v372 = vand.u32 %v371, 4294901760
    %373 = vmatpush.msra.mxu0 %v372
    %v374 = vand.u32 %v225, 4294901760
    %375 = vmatmul.f32.gmra.mxu0 %v374
    %v376 = vpop.f32.mrf.mxu0
    %v377 = vadd.f32 %v347, %v376
    %v378 = vand.u32 %v228, 4294901760
    %379 = vmatmul.f32.gmra.mxu0 %v378
    %v380 = vpop.f32.mrf.mxu0
    %v381 = vadd.f32 %v353, %v380
    %382 = vdwg.mxu0
    %383 = vmatpush.msra.mxu0 0.0
    %384 = vmatpush.msra.mxu0 0.0
    %385 = vmatpush.msra.mxu0 0.0
    %386 = vmatpush.msra.mxu0 0.0
    %387 = vmatpush.msra.mxu0 0.0
    %388 = vmatpush.msra.mxu0 0.0
    %389 = vmatpush.msra.mxu0 0.0
    %390 = vmatpush.msra.mxu0 0.0
    %391 = vmatpush.msra.mxu0 0.0
    %392 = vmatpush.msra.mxu0 0.0
    %393 = vmatpush.msra.mxu0 0.0
    %394 = vmatpush.msra.mxu0 0.0
    %395 = vmatpush.msra.mxu0 0.0
    %396 = vmatpush.msra.mxu0 0.0
    %397 = vmatpush.msra.mxu0 0.0
    %v398 = vand.u32 %v230, 4294901760
    %399 = vmatpush.msra.mxu0 %v398
    %v400 = vand.u32 %v225, 4294901760
    %401 = vmatmul.f32.gmra.mxu0 %v400
    %v402 = vpop.f32.mrf.mxu0
    %v403 = vadd.f32 %v377, %v402
    %v404 = vand.u32 %v228, 4294901760
    %405 = vmatmul.f32.gmra.mxu0 %v404
    %v406 = vpop.f32.mrf.mxu0
    %v407 = vadd.f32 %v381, %v406
    %408 = vdwg.mxu0
    %s409 = scalar_lea.vmem %s1, 32
    %v410 = vld [vmem:[%s409] sm:$0xff]
    %v411 = vld [vmem:[%s409 + $0x8] sm:$0xf]
    %412 = vrot.lane.b32.xlu0 %v24, 126
    %v413 = vpop.permute.xlu0 %412
    %vm415 = vcmask 1031168
    %v416 = vsel %vm415, %v413, 0.0
    %v418 = vsel %vm36, %v410, 0
    %v421 = vsel %vm36, %v411, 0
    %v424 = vsel %vm43, %v416, 0
    %426 = vmatpush.msra.mxu0 0.0
    %427 = vmatpush.msra.mxu0 0.0
    %428 = vmatpush.msra.mxu0 0.0
    %429 = vmatpush.msra.mxu0 0.0
    %430 = vmatpush.msra.mxu0 0.0
    %431 = vmatpush.msra.mxu0 0.0
    %432 = vmatpush.msra.mxu0 0.0
    %433 = vmatpush.msra.mxu0 0.0
    %434 = vmatpush.msra.mxu0 0.0
    %435 = vmatpush.msra.mxu0 0.0
    %436 = vmatpush.msra.mxu0 0.0
    %437 = vmatpush.msra.mxu0 0.0
    %438 = vmatpush.msra.mxu0 0.0
    %439 = vmatpush.msra.mxu0 0.0
    %440 = vmatpush.msra.mxu0 0.0
    %v441 = vand.u32 %v424, 4294901760
    %442 = vmatpush.msra.mxu0 %v441
    %v443 = vand.u32 %v418, 4294901760
    %v444 = vsub.f32 %v418, %v443
    %v445 = vand.u32 %v444, 4294901760
    %v446 = vsub.f32 %v444, %v445
    %v447 = vand.u32 %v446, 4294901760
    %448 = vmatmul.f32.gmra.mxu0 %v447
    %v449 = vpop.f32.mrf.mxu0
    %v450 = vadd.f32 0.0, %v449
    %v451 = vand.u32 %v421, 4294901760
    %v452 = vsub.f32 %v421, %v451
    %v453 = vand.u32 %v452, 4294901760
    %v454 = vsub.f32 %v452, %v453
    %v455 = vand.u32 %v454, 4294901760
    %456 = vmatmul.f32.gmra.mxu0 %v455
    %v457 = vpop.f32.mrf.mxu0
    %v458 = vadd.f32 0.0, %v457
    %459 = vdwg.mxu0
    %460 = vmatpush.msra.mxu0 0.0
    %461 = vmatpush.msra.mxu0 0.0
    %462 = vmatpush.msra.mxu0 0.0
    %463 = vmatpush.msra.mxu0 0.0
    %464 = vmatpush.msra.mxu0 0.0
    %465 = vmatpush.msra.mxu0 0.0
    %466 = vmatpush.msra.mxu0 0.0
    %467 = vmatpush.msra.mxu0 0.0
    %468 = vmatpush.msra.mxu0 0.0
    %469 = vmatpush.msra.mxu0 0.0
    %470 = vmatpush.msra.mxu0 0.0
    %471 = vmatpush.msra.mxu0 0.0
    %472 = vmatpush.msra.mxu0 0.0
    %473 = vmatpush.msra.mxu0 0.0
    %474 = vmatpush.msra.mxu0 0.0
    %v475 = vand.u32 %v424, 4294901760
    %v476 = vsub.f32 %v424, %v475
    %v477 = vand.u32 %v476, 4294901760
    %v478 = vsub.f32 %v476, %v477
    %v479 = vand.u32 %v478, 4294901760
    %480 = vmatpush.msra.mxu0 %v479
    %v481 = vand.u32 %v418, 4294901760
    %482 = vmatmul.f32.gmra.mxu0 %v481
    %v483 = vpop.f32.mrf.mxu0
    %v484 = vadd.f32 %v450, %v483
    %v485 = vand.u32 %v421, 4294901760
    %486 = vmatmul.f32.gmra.mxu0 %v485
    %v487 = vpop.f32.mrf.mxu0
    %v488 = vadd.f32 %v458, %v487
    %489 = vdwg.mxu0
    %490 = vmatpush.msra.mxu0 0.0
    %491 = vmatpush.msra.mxu0 0.0
    %492 = vmatpush.msra.mxu0 0.0
    %493 = vmatpush.msra.mxu0 0.0
    %494 = vmatpush.msra.mxu0 0.0
    %495 = vmatpush.msra.mxu0 0.0
    %496 = vmatpush.msra.mxu0 0.0
    %497 = vmatpush.msra.mxu0 0.0
    %498 = vmatpush.msra.mxu0 0.0
    %499 = vmatpush.msra.mxu0 0.0
    %500 = vmatpush.msra.mxu0 0.0
    %501 = vmatpush.msra.mxu0 0.0
    %502 = vmatpush.msra.mxu0 0.0
    %503 = vmatpush.msra.mxu0 0.0
    %504 = vmatpush.msra.mxu0 0.0
    %v505 = vand.u32 %v424, 4294901760
    %v506 = vsub.f32 %v424, %v505
    %507 = vmatpush.msra.mxu0 %v506
    %v508 = vand.u32 %v418, 4294901760
    %v509 = vsub.f32 %v418, %v508
    %510 = vmatmul.f32.gmra.mxu0 %v509
    %v511 = vpop.f32.mrf.mxu0
    %v512 = vadd.f32 %v484, %v511
    %v513 = vand.u32 %v421, 4294901760
    %v514 = vsub.f32 %v421, %v513
    %515 = vmatmul.f32.gmra.mxu0 %v514
    %v516 = vpop.f32.mrf.mxu0
    %v517 = vadd.f32 %v488, %v516
    %518 = vdwg.mxu0
    %519 = vmatpush.msra.mxu0 0.0
    %520 = vmatpush.msra.mxu0 0.0
    %521 = vmatpush.msra.mxu0 0.0
    %522 = vmatpush.msra.mxu0 0.0
    %523 = vmatpush.msra.mxu0 0.0
    %524 = vmatpush.msra.mxu0 0.0
    %525 = vmatpush.msra.mxu0 0.0
    %526 = vmatpush.msra.mxu0 0.0
    %527 = vmatpush.msra.mxu0 0.0
    %528 = vmatpush.msra.mxu0 0.0
    %529 = vmatpush.msra.mxu0 0.0
    %530 = vmatpush.msra.mxu0 0.0
    %531 = vmatpush.msra.mxu0 0.0
    %532 = vmatpush.msra.mxu0 0.0
    %533 = vmatpush.msra.mxu0 0.0
    %v534 = vand.u32 %v424, 4294901760
    %535 = vmatpush.msra.mxu0 %v534
    %v536 = vand.u32 %v418, 4294901760
    %v537 = vsub.f32 %v418, %v536
    %v538 = vand.u32 %v537, 4294901760
    %539 = vmatmul.f32.gmra.mxu0 %v538
    %v540 = vpop.f32.mrf.mxu0
    %v541 = vadd.f32 %v512, %v540
    %v542 = vand.u32 %v421, 4294901760
    %v543 = vsub.f32 %v421, %v542
    %v544 = vand.u32 %v543, 4294901760
    %545 = vmatmul.f32.gmra.mxu0 %v544
    %v546 = vpop.f32.mrf.mxu0
    %v547 = vadd.f32 %v517, %v546
    %548 = vdwg.mxu0
    %549 = vmatpush.msra.mxu0 0.0
    %550 = vmatpush.msra.mxu0 0.0
    %551 = vmatpush.msra.mxu0 0.0
    %552 = vmatpush.msra.mxu0 0.0
    %553 = vmatpush.msra.mxu0 0.0
    %554 = vmatpush.msra.mxu0 0.0
    %555 = vmatpush.msra.mxu0 0.0
    %556 = vmatpush.msra.mxu0 0.0
    %557 = vmatpush.msra.mxu0 0.0
    %558 = vmatpush.msra.mxu0 0.0
    %559 = vmatpush.msra.mxu0 0.0
    %560 = vmatpush.msra.mxu0 0.0
    %561 = vmatpush.msra.mxu0 0.0
    %562 = vmatpush.msra.mxu0 0.0
    %563 = vmatpush.msra.mxu0 0.0
    %v564 = vand.u32 %v424, 4294901760
    %v565 = vsub.f32 %v424, %v564
    %v566 = vand.u32 %v565, 4294901760
    %567 = vmatpush.msra.mxu0 %v566
    %v568 = vand.u32 %v418, 4294901760
    %569 = vmatmul.f32.gmra.mxu0 %v568
    %v570 = vpop.f32.mrf.mxu0
    %v571 = vadd.f32 %v541, %v570
    %v572 = vand.u32 %v421, 4294901760
    %573 = vmatmul.f32.gmra.mxu0 %v572
    %v574 = vpop.f32.mrf.mxu0
    %v575 = vadd.f32 %v547, %v574
    %576 = vdwg.mxu0
    %577 = vmatpush.msra.mxu0 0.0
    %578 = vmatpush.msra.mxu0 0.0
    %579 = vmatpush.msra.mxu0 0.0
    %580 = vmatpush.msra.mxu0 0.0
    %581 = vmatpush.msra.mxu0 0.0
    %582 = vmatpush.msra.mxu0 0.0
    %583 = vmatpush.msra.mxu0 0.0
    %584 = vmatpush.msra.mxu0 0.0
    %585 = vmatpush.msra.mxu0 0.0
    %586 = vmatpush.msra.mxu0 0.0
    %587 = vmatpush.msra.mxu0 0.0
    %588 = vmatpush.msra.mxu0 0.0
    %589 = vmatpush.msra.mxu0 0.0
    %590 = vmatpush.msra.mxu0 0.0
    %591 = vmatpush.msra.mxu0 0.0
    %v592 = vand.u32 %v424, 4294901760
    %593 = vmatpush.msra.mxu0 %v592
    %v594 = vand.u32 %v418, 4294901760
    %595 = vmatmul.f32.gmra.mxu0 %v594
    %v596 = vpop.f32.mrf.mxu0
    %v597 = vadd.f32 %v571, %v596
    %v598 = vand.u32 %v421, 4294901760
    %599 = vmatmul.f32.gmra.mxu0 %v598
    %v600 = vpop.f32.mrf.mxu0
    %v601 = vadd.f32 %v575, %v600
    %602 = vdwg.mxu0
    %v603 = vadd.f32 %v403, %v597
    %v604 = vadd.f32 %v407, %v601
    %s605 = scalar_lea.vmem %s1, 48
    %v606 = vld [vmem:[%s605] sm:$0xff]
    %v607 = vld [vmem:[%s605 + $0x8] sm:$0xf]
    %608 = vrot.lane.b32.xlu0 %v24, 125
    %v609 = vpop.permute.xlu0 %608
    %vm611 = vcmask 1022976
    %v612 = vsel %vm611, %v609, 0.0
    %v614 = vsel %vm36, %v606, 0
    %v617 = vsel %vm36, %v607, 0
    %v620 = vsel %vm43, %v612, 0
    %622 = vmatpush.msra.mxu0 0.0
    %623 = vmatpush.msra.mxu0 0.0
    %624 = vmatpush.msra.mxu0 0.0
    %625 = vmatpush.msra.mxu0 0.0
    %626 = vmatpush.msra.mxu0 0.0
    %627 = vmatpush.msra.mxu0 0.0
    %628 = vmatpush.msra.mxu0 0.0
    %629 = vmatpush.msra.mxu0 0.0
    %630 = vmatpush.msra.mxu0 0.0
    %631 = vmatpush.msra.mxu0 0.0
    %632 = vmatpush.msra.mxu0 0.0
    %633 = vmatpush.msra.mxu0 0.0
    %634 = vmatpush.msra.mxu0 0.0
    %635 = vmatpush.msra.mxu0 0.0
    %636 = vmatpush.msra.mxu0 0.0
    %v637 = vand.u32 %v620, 4294901760
    %638 = vmatpush.msra.mxu0 %v637
    %v639 = vand.u32 %v614, 4294901760
    %v640 = vsub.f32 %v614, %v639
    %v641 = vand.u32 %v640, 4294901760
    %v642 = vsub.f32 %v640, %v641
    %v643 = vand.u32 %v642, 4294901760
    %644 = vmatmul.f32.gmra.mxu0 %v643
    %v645 = vpop.f32.mrf.mxu0
    %v646 = vadd.f32 0.0, %v645
    %v647 = vand.u32 %v617, 4294901760
    %v648 = vsub.f32 %v617, %v647
    %v649 = vand.u32 %v648, 4294901760
    %v650 = vsub.f32 %v648, %v649
    %v651 = vand.u32 %v650, 4294901760
    %652 = vmatmul.f32.gmra.mxu0 %v651
    %v653 = vpop.f32.mrf.mxu0
    %v654 = vadd.f32 0.0, %v653
    %655 = vdwg.mxu0
    %656 = vmatpush.msra.mxu0 0.0
    %657 = vmatpush.msra.mxu0 0.0
    %658 = vmatpush.msra.mxu0 0.0
    %659 = vmatpush.msra.mxu0 0.0
    %660 = vmatpush.msra.mxu0 0.0
    %661 = vmatpush.msra.mxu0 0.0
    %662 = vmatpush.msra.mxu0 0.0
    %663 = vmatpush.msra.mxu0 0.0
    %664 = vmatpush.msra.mxu0 0.0
    %665 = vmatpush.msra.mxu0 0.0
    %666 = vmatpush.msra.mxu0 0.0
    %667 = vmatpush.msra.mxu0 0.0
    %668 = vmatpush.msra.mxu0 0.0
    %669 = vmatpush.msra.mxu0 0.0
    %670 = vmatpush.msra.mxu0 0.0
    %v671 = vand.u32 %v620, 4294901760
    %v672 = vsub.f32 %v620, %v671
    %v673 = vand.u32 %v672, 4294901760
    %v674 = vsub.f32 %v672, %v673
    %v675 = vand.u32 %v674, 4294901760
    %676 = vmatpush.msra.mxu0 %v675
    %v677 = vand.u32 %v614, 4294901760
    %678 = vmatmul.f32.gmra.mxu0 %v677
    %v679 = vpop.f32.mrf.mxu0
    %v680 = vadd.f32 %v646, %v679
    %v681 = vand.u32 %v617, 4294901760
    %682 = vmatmul.f32.gmra.mxu0 %v681
    %v683 = vpop.f32.mrf.mxu0
    %v684 = vadd.f32 %v654, %v683
    %685 = vdwg.mxu0
    %686 = vmatpush.msra.mxu0 0.0
    %687 = vmatpush.msra.mxu0 0.0
    %688 = vmatpush.msra.mxu0 0.0
    %689 = vmatpush.msra.mxu0 0.0
    %690 = vmatpush.msra.mxu0 0.0
    %691 = vmatpush.msra.mxu0 0.0
    %692 = vmatpush.msra.mxu0 0.0
    %693 = vmatpush.msra.mxu0 0.0
    %694 = vmatpush.msra.mxu0 0.0
    %695 = vmatpush.msra.mxu0 0.0
    %696 = vmatpush.msra.mxu0 0.0
    %697 = vmatpush.msra.mxu0 0.0
    %698 = vmatpush.msra.mxu0 0.0
    %699 = vmatpush.msra.mxu0 0.0
    %700 = vmatpush.msra.mxu0 0.0
    %v701 = vand.u32 %v620, 4294901760
    %v702 = vsub.f32 %v620, %v701
    %703 = vmatpush.msra.mxu0 %v702
    %v704 = vand.u32 %v614, 4294901760
    %v705 = vsub.f32 %v614, %v704
    %706 = vmatmul.f32.gmra.mxu0 %v705
    %v707 = vpop.f32.mrf.mxu0
    %v708 = vadd.f32 %v680, %v707
    %v709 = vand.u32 %v617, 4294901760
    %v710 = vsub.f32 %v617, %v709
    %711 = vmatmul.f32.gmra.mxu0 %v710
    %v712 = vpop.f32.mrf.mxu0
    %v713 = vadd.f32 %v684, %v712
    %714 = vdwg.mxu0
    %715 = vmatpush.msra.mxu0 0.0
    %716 = vmatpush.msra.mxu0 0.0
    %717 = vmatpush.msra.mxu0 0.0
    %718 = vmatpush.msra.mxu0 0.0
    %719 = vmatpush.msra.mxu0 0.0
    %720 = vmatpush.msra.mxu0 0.0
    %721 = vmatpush.msra.mxu0 0.0
    %722 = vmatpush.msra.mxu0 0.0
    %723 = vmatpush.msra.mxu0 0.0
    %724 = vmatpush.msra.mxu0 0.0
    %725 = vmatpush.msra.mxu0 0.0
    %726 = vmatpush.msra.mxu0 0.0
    %727 = vmatpush.msra.mxu0 0.0
    %728 = vmatpush.msra.mxu0 0.0
    %729 = vmatpush.msra.mxu0 0.0
    %v730 = vand.u32 %v620, 4294901760
    %731 = vmatpush.msra.mxu0 %v730
    %v732 = vand.u32 %v614, 4294901760
    %v733 = vsub.f32 %v614, %v732
    %v734 = vand.u32 %v733, 4294901760
    %735 = vmatmul.f32.gmra.mxu0 %v734
    %v736 = vpop.f32.mrf.mxu0
    %v737 = vadd.f32 %v708, %v736
    %v738 = vand.u32 %v617, 4294901760
    %v739 = vsub.f32 %v617, %v738
    %v740 = vand.u32 %v739, 4294901760
    %741 = vmatmul.f32.gmra.mxu0 %v740
    %v742 = vpop.f32.mrf.mxu0
    %v743 = vadd.f32 %v713, %v742
    %744 = vdwg.mxu0
    %745 = vmatpush.msra.mxu0 0.0
    %746 = vmatpush.msra.mxu0 0.0
    %747 = vmatpush.msra.mxu0 0.0
    %748 = vmatpush.msra.mxu0 0.0
    %749 = vmatpush.msra.mxu0 0.0
    %750 = vmatpush.msra.mxu0 0.0
    %751 = vmatpush.msra.mxu0 0.0
    %752 = vmatpush.msra.mxu0 0.0
    %753 = vmatpush.msra.mxu0 0.0
    %754 = vmatpush.msra.mxu0 0.0
    %755 = vmatpush.msra.mxu0 0.0
    %756 = vmatpush.msra.mxu0 0.0
    %757 = vmatpush.msra.mxu0 0.0
    %758 = vmatpush.msra.mxu0 0.0
    %759 = vmatpush.msra.mxu0 0.0
    %v760 = vand.u32 %v620, 4294901760
    %v761 = vsub.f32 %v620, %v760
    %v762 = vand.u32 %v761, 4294901760
    %763 = vmatpush.msra.mxu0 %v762
    %v764 = vand.u32 %v614, 4294901760
    %765 = vmatmul.f32.gmra.mxu0 %v764
    %v766 = vpop.f32.mrf.mxu0
    %v767 = vadd.f32 %v737, %v766
    %v768 = vand.u32 %v617, 4294901760
    %769 = vmatmul.f32.gmra.mxu0 %v768
    %v770 = vpop.f32.mrf.mxu0
    %v771 = vadd.f32 %v743, %v770
    %772 = vdwg.mxu0
    %773 = vmatpush.msra.mxu0 0.0
    %774 = vmatpush.msra.mxu0 0.0
    %775 = vmatpush.msra.mxu0 0.0
    %776 = vmatpush.msra.mxu0 0.0
    %777 = vmatpush.msra.mxu0 0.0
    %778 = vmatpush.msra.mxu0 0.0
    %779 = vmatpush.msra.mxu0 0.0
    %780 = vmatpush.msra.mxu0 0.0
    %781 = vmatpush.msra.mxu0 0.0
    %782 = vmatpush.msra.mxu0 0.0
    %783 = vmatpush.msra.mxu0 0.0
    %784 = vmatpush.msra.mxu0 0.0
    %785 = vmatpush.msra.mxu0 0.0
    %786 = vmatpush.msra.mxu0 0.0
    %787 = vmatpush.msra.mxu0 0.0
    %v788 = vand.u32 %v620, 4294901760
    %789 = vmatpush.msra.mxu0 %v788
    %v790 = vand.u32 %v614, 4294901760
    %791 = vmatmul.f32.gmra.mxu0 %v790
    %v792 = vpop.f32.mrf.mxu0
    %v793 = vadd.f32 %v767, %v792
    %v794 = vand.u32 %v617, 4294901760
    %795 = vmatmul.f32.gmra.mxu0 %v794
    %v796 = vpop.f32.mrf.mxu0
    %v797 = vadd.f32 %v771, %v796
    %798 = vdwg.mxu0
    %v799 = vadd.f32 %v603, %v793
    %v800 = vadd.f32 %v604, %v797
    %s801 = scalar_lea.vmem %s1, 64
    %v802 = vld [vmem:[%s801] sm:$0xff]
    %v803 = vld [vmem:[%s801 + $0x8] sm:$0xf]
    %804 = vrot.lane.b32.xlu0 %v24, 124
    %v805 = vpop.permute.xlu0 %804
    %vm807 = vcmask 1014784
    %v808 = vsel %vm807, %v805, 0.0
    %v810 = vsel %vm36, %v802, 0
    %v813 = vsel %vm36, %v803, 0
    %v816 = vsel %vm43, %v808, 0
    %818 = vmatpush.msra.mxu0 0.0
    %819 = vmatpush.msra.mxu0 0.0
    %820 = vmatpush.msra.mxu0 0.0
    %821 = vmatpush.msra.mxu0 0.0
    %822 = vmatpush.msra.mxu0 0.0
    %823 = vmatpush.msra.mxu0 0.0
    %824 = vmatpush.msra.mxu0 0.0
    %825 = vmatpush.msra.mxu0 0.0
    %826 = vmatpush.msra.mxu0 0.0
    %827 = vmatpush.msra.mxu0 0.0
    %828 = vmatpush.msra.mxu0 0.0
    %829 = vmatpush.msra.mxu0 0.0
    %830 = vmatpush.msra.mxu0 0.0
    %831 = vmatpush.msra.mxu0 0.0
    %832 = vmatpush.msra.mxu0 0.0
    %v833 = vand.u32 %v816, 4294901760
    %834 = vmatpush.msra.mxu0 %v833
    %v835 = vand.u32 %v810, 4294901760
    %v836 = vsub.f32 %v810, %v835
    %v837 = vand.u32 %v836, 4294901760
    %v838 = vsub.f32 %v836, %v837
    %v839 = vand.u32 %v838, 4294901760
    %840 = vmatmul.f32.gmra.mxu0 %v839
    %v841 = vpop.f32.mrf.mxu0
    %v842 = vadd.f32 0.0, %v841
    %v843 = vand.u32 %v813, 4294901760
    %v844 = vsub.f32 %v813, %v843
    %v845 = vand.u32 %v844, 4294901760
    %v846 = vsub.f32 %v844, %v845
    %v847 = vand.u32 %v846, 4294901760
    %848 = vmatmul.f32.gmra.mxu0 %v847
    %v849 = vpop.f32.mrf.mxu0
    %v850 = vadd.f32 0.0, %v849
    %851 = vdwg.mxu0
    %852 = vmatpush.msra.mxu0 0.0
    %853 = vmatpush.msra.mxu0 0.0
    %854 = vmatpush.msra.mxu0 0.0
    %855 = vmatpush.msra.mxu0 0.0
    %856 = vmatpush.msra.mxu0 0.0
    %857 = vmatpush.msra.mxu0 0.0
    %858 = vmatpush.msra.mxu0 0.0
    %859 = vmatpush.msra.mxu0 0.0
    %860 = vmatpush.msra.mxu0 0.0
    %861 = vmatpush.msra.mxu0 0.0
    %862 = vmatpush.msra.mxu0 0.0
    %863 = vmatpush.msra.mxu0 0.0
    %864 = vmatpush.msra.mxu0 0.0
    %865 = vmatpush.msra.mxu0 0.0
    %866 = vmatpush.msra.mxu0 0.0
    %v867 = vand.u32 %v816, 4294901760
    %v868 = vsub.f32 %v816, %v867
    %v869 = vand.u32 %v868, 4294901760
    %v870 = vsub.f32 %v868, %v869
    %v871 = vand.u32 %v870, 4294901760
    %872 = vmatpush.msra.mxu0 %v871
    %v873 = vand.u32 %v810, 4294901760
    %874 = vmatmul.f32.gmra.mxu0 %v873
    %v875 = vpop.f32.mrf.mxu0
    %v876 = vadd.f32 %v842, %v875
    %v877 = vand.u32 %v813, 4294901760
    %878 = vmatmul.f32.gmra.mxu0 %v877
    %v879 = vpop.f32.mrf.mxu0
    %v880 = vadd.f32 %v850, %v879
    %881 = vdwg.mxu0
    %882 = vmatpush.msra.mxu0 0.0
    %883 = vmatpush.msra.mxu0 0.0
    %884 = vmatpush.msra.mxu0 0.0
    %885 = vmatpush.msra.mxu0 0.0
    %886 = vmatpush.msra.mxu0 0.0
    %887 = vmatpush.msra.mxu0 0.0
    %888 = vmatpush.msra.mxu0 0.0
    %889 = vmatpush.msra.mxu0 0.0
    %890 = vmatpush.msra.mxu0 0.0
    %891 = vmatpush.msra.mxu0 0.0
    %892 = vmatpush.msra.mxu0 0.0
    %893 = vmatpush.msra.mxu0 0.0
    %894 = vmatpush.msra.mxu0 0.0
    %895 = vmatpush.msra.mxu0 0.0
    %896 = vmatpush.msra.mxu0 0.0
    %v897 = vand.u32 %v816, 4294901760
    %v898 = vsub.f32 %v816, %v897
    %899 = vmatpush.msra.mxu0 %v898
    %v900 = vand.u32 %v810, 4294901760
    %v901 = vsub.f32 %v810, %v900
    %902 = vmatmul.f32.gmra.mxu0 %v901
    %v903 = vpop.f32.mrf.mxu0
    %v904 = vadd.f32 %v876, %v903
    %v905 = vand.u32 %v813, 4294901760
    %v906 = vsub.f32 %v813, %v905
    %907 = vmatmul.f32.gmra.mxu0 %v906
    %v908 = vpop.f32.mrf.mxu0
    %v909 = vadd.f32 %v880, %v908
    %910 = vdwg.mxu0
    %911 = vmatpush.msra.mxu0 0.0
    %912 = vmatpush.msra.mxu0 0.0
    %913 = vmatpush.msra.mxu0 0.0
    %914 = vmatpush.msra.mxu0 0.0
    %915 = vmatpush.msra.mxu0 0.0
    %916 = vmatpush.msra.mxu0 0.0
    %917 = vmatpush.msra.mxu0 0.0
    %918 = vmatpush.msra.mxu0 0.0
    %919 = vmatpush.msra.mxu0 0.0
    %920 = vmatpush.msra.mxu0 0.0
    %921 = vmatpush.msra.mxu0 0.0
    %922 = vmatpush.msra.mxu0 0.0
    %923 = vmatpush.msra.mxu0 0.0
    %924 = vmatpush.msra.mxu0 0.0
    %925 = vmatpush.msra.mxu0 0.0
    %v926 = vand.u32 %v816, 4294901760
    %927 = vmatpush.msra.mxu0 %v926
    %v928 = vand.u32 %v810, 4294901760
    %v929 = vsub.f32 %v810, %v928
    %v930 = vand.u32 %v929, 4294901760
    %931 = vmatmul.f32.gmra.mxu0 %v930
    %v932 = vpop.f32.mrf.mxu0
    %v933 = vadd.f32 %v904, %v932
    %v934 = vand.u32 %v813, 4294901760
    %v935 = vsub.f32 %v813, %v934
    %v936 = vand.u32 %v935, 4294901760
    %937 = vmatmul.f32.gmra.mxu0 %v936
    %v938 = vpop.f32.mrf.mxu0
    %v939 = vadd.f32 %v909, %v938
    %940 = vdwg.mxu0
    %941 = vmatpush.msra.mxu0 0.0
    %942 = vmatpush.msra.mxu0 0.0
    %943 = vmatpush.msra.mxu0 0.0
    %944 = vmatpush.msra.mxu0 0.0
    %945 = vmatpush.msra.mxu0 0.0
    %946 = vmatpush.msra.mxu0 0.0
    %947 = vmatpush.msra.mxu0 0.0
    %948 = vmatpush.msra.mxu0 0.0
    %949 = vmatpush.msra.mxu0 0.0
    %950 = vmatpush.msra.mxu0 0.0
    %951 = vmatpush.msra.mxu0 0.0
    %952 = vmatpush.msra.mxu0 0.0
    %953 = vmatpush.msra.mxu0 0.0
    %954 = vmatpush.msra.mxu0 0.0
    %955 = vmatpush.msra.mxu0 0.0
    %v956 = vand.u32 %v816, 4294901760
    %v957 = vsub.f32 %v816, %v956
    %v958 = vand.u32 %v957, 4294901760
    %959 = vmatpush.msra.mxu0 %v958
    %v960 = vand.u32 %v810, 4294901760
    %961 = vmatmul.f32.gmra.mxu0 %v960
    %v962 = vpop.f32.mrf.mxu0
    %v963 = vadd.f32 %v933, %v962
    %v964 = vand.u32 %v813, 4294901760
    %965 = vmatmul.f32.gmra.mxu0 %v964
    %v966 = vpop.f32.mrf.mxu0
    %v967 = vadd.f32 %v939, %v966
    %968 = vdwg.mxu0
    %969 = vmatpush.msra.mxu0 0.0
    %970 = vmatpush.msra.mxu0 0.0
    %971 = vmatpush.msra.mxu0 0.0
    %972 = vmatpush.msra.mxu0 0.0
    %973 = vmatpush.msra.mxu0 0.0
    %974 = vmatpush.msra.mxu0 0.0
    %975 = vmatpush.msra.mxu0 0.0
    %976 = vmatpush.msra.mxu0 0.0
    %977 = vmatpush.msra.mxu0 0.0
    %978 = vmatpush.msra.mxu0 0.0
    %979 = vmatpush.msra.mxu0 0.0
    %980 = vmatpush.msra.mxu0 0.0
    %981 = vmatpush.msra.mxu0 0.0
    %982 = vmatpush.msra.mxu0 0.0
    %983 = vmatpush.msra.mxu0 0.0
    %v984 = vand.u32 %v816, 4294901760
    %985 = vmatpush.msra.mxu0 %v984
    %v986 = vand.u32 %v810, 4294901760
    %987 = vmatmul.f32.gmra.mxu0 %v986
    %v988 = vpop.f32.mrf.mxu0
    %v989 = vadd.f32 %v963, %v988
    %v990 = vand.u32 %v813, 4294901760
    %991 = vmatmul.f32.gmra.mxu0 %v990
    %v992 = vpop.f32.mrf.mxu0
    %v993 = vadd.f32 %v967, %v992
    %994 = vdwg.mxu0
    %v995 = vadd.f32 %v799, %v989
    %v996 = vadd.f32 %v800, %v993
    %v997 = vld [vmem:[%s2] sm:$0xff]
    %v998 = vld [vmem:[%s2 + $0x8] sm:$0xf]
    %1000 = vset.pattern.permute.xlu0 0
    %1001 = vperm.xlu0 %1000, %v997
    %v1002 = vpop.permute.xlu0 %1001
    %1005 = vset.pattern.permute.xlu0 0
    %1006 = vperm.xlu0 %1005, %v998
    %v1007 = vpop.permute.xlu0 %1006
    %v1009 = vadd.f32 %v995, %v1002
    %v1010 = vadd.f32 %v996, %v1007
    %v1011 = vmax.f32 %v1009, 0.0
    %v1012 = vmax.f32 %v1010, 0.0
    %1015 = vrot.lane.b32.xlu0 %v1011, 127
    %v1016 = vpop.permute.xlu0 %1015
    %1017 = vrot.lane.b32.xlu0 %v1012, 127
    %v1018 = vpop.permute.xlu0 %1017
    %v1021 = vsel %vm34, %v1016, 0.0
    %v1022 = vsel %vm34, %v1018, 0.0
    %v1023 = vmax.f32 %v1011, %v1021
    %v1024 = vmax.f32 %v1012, %v1022
    %1025 = vrot.lane.b32.xlu0 %v1011, 126
    %v1026 = vpop.permute.xlu0 %1025
    %1027 = vrot.lane.b32.xlu0 %v1012, 126
    %v1028 = vpop.permute.xlu0 %1027
    %v1031 = vsel %vm415, %v1026, 0.0
    %v1032 = vsel %vm415, %v1028, 0.0
    %v1033 = vmax.f32 %v1023, %v1031
    %v1034 = vmax.f32 %v1024, %v1032
    %1035 = vrot.lane.b32.xlu0 %v1011, 125
    %v1036 = vpop.permute.xlu0 %1035
    %1037 = vrot.lane.b32.xlu0 %v1012, 125
    %v1038 = vpop.permute.xlu0 %1037
    %v1041 = vsel %vm611, %v1036, 0.0
    %v1042 = vsel %vm611, %v1038, 0.0
    %v1043 = vmax.f32 %v1033, %v1041
    %v1044 = vmax.f32 %v1034, %v1042
    %1045 = vrot.lane.b32.xlu0 %v1011, 124
    %v1046 = vpop.permute.xlu0 %1045
    %1047 = vrot.lane.b32.xlu0 %v1012, 124
    %v1048 = vpop.permute.xlu0 %1047
    %v1051 = vsel %vm807, %v1046, 0.0
    %v1052 = vsel %vm807, %v1048, 0.0
    %v1053 = vmax.f32 %v1043, %v1051
    %v1054 = vmax.f32 %v1044, %v1052
    %v1055 = vld [vmem:[%s5] sm:$0xff]
    %v1056 = vld [vmem:[%s5 + $0x8] sm:$0xff]
    %v1057 = vld [vmem:[%s5 + $0x10] sm:$0xff]
    %v1058 = vld [vmem:[%s5 + $0x18] sm:$0xff]
    %v1059 = vld [vmem:[%s5 + $0x20] sm:$0xff]
    %v1060 = vld [vmem:[%s5 + $0x28] sm:$0xff]
    %v1061 = vld [vmem:[%s5 + $0x30] sm:$0xff]
    %v1062 = vld [vmem:[%s5 + $0x38] sm:$0xff]
    %v1063 = vld [vmem:[%s5 + $0x40] sm:$0xff]
    %v1064 = vld [vmem:[%s5 + $0x48] sm:$0xff]
    %v1065 = vld [vmem:[%s5 + $0x50] sm:$0xff]
    %v1066 = vld [vmem:[%s5 + $0x58] sm:$0xff]
    %v1067 = vld [vmem:[%s5 + $0x60] sm:$0xff]
    %v1068 = vld [vmem:[%s5 + $0x68] sm:$0xff]
    %v1069 = vld [vmem:[%s5 + $0x70] sm:$0xff]
    %v1070 = vld [vmem:[%s5 + $0x78] sm:$0xff]
    %v1071 = vand.u32 %v1070, 4294901760
    %1072 = vmatpush.msra.mxu0 %v1071
    %v1073 = vand.u32 %v1069, 4294901760
    %1074 = vmatpush.msra.mxu0 %v1073
    %v1075 = vand.u32 %v1068, 4294901760
    %1076 = vmatpush.msra.mxu0 %v1075
    %v1077 = vand.u32 %v1067, 4294901760
    %1078 = vmatpush.msra.mxu0 %v1077
    %v1079 = vand.u32 %v1066, 4294901760
    %1080 = vmatpush.msra.mxu0 %v1079
    %v1081 = vand.u32 %v1065, 4294901760
    %1082 = vmatpush.msra.mxu0 %v1081
    %v1083 = vand.u32 %v1064, 4294901760
    %1084 = vmatpush.msra.mxu0 %v1083
    %v1085 = vand.u32 %v1063, 4294901760
    %1086 = vmatpush.msra.mxu0 %v1085
    %v1087 = vand.u32 %v1062, 4294901760
    %1088 = vmatpush.msra.mxu0 %v1087
    %v1089 = vand.u32 %v1061, 4294901760
    %1090 = vmatpush.msra.mxu0 %v1089
    %v1091 = vand.u32 %v1060, 4294901760
    %1092 = vmatpush.msra.mxu0 %v1091
    %v1093 = vand.u32 %v1059, 4294901760
    %1094 = vmatpush.msra.mxu0 %v1093
    %v1095 = vand.u32 %v1058, 4294901760
    %1096 = vmatpush.msra.mxu0 %v1095
    %v1097 = vand.u32 %v1057, 4294901760
    %1098 = vmatpush.msra.mxu0 %v1097
    %v1099 = vand.u32 %v1056, 4294901760
    %1100 = vmatpush.msra.mxu0 %v1099
    %v1101 = vand.u32 %v1055, 4294901760
    %1102 = vmatpush.msra.mxu0 %v1101
    %v1103 = vand.u32 %v1053, 4294901760
    %v1104 = vsub.f32 %v1053, %v1103
    %v1105 = vand.u32 %v1104, 4294901760
    %v1106 = vsub.f32 %v1104, %v1105
    %v1107 = vand.u32 %v1106, 4294901760
    %1108 = vmatmul.f32.gmra.mxu0 %v1107
    %v1109 = vpop.f32.mrf.mxu0
    %v1110 = vadd.f32 0.0, %v1109
    %v1111 = vand.u32 %v1054, 4294901760
    %v1112 = vsub.f32 %v1054, %v1111
    %v1113 = vand.u32 %v1112, 4294901760
    %v1114 = vsub.f32 %v1112, %v1113
    %v1115 = vand.u32 %v1114, 4294901760
    %1116 = vmatmul.f32.gmra.mxu0 %v1115
    %v1117 = vpop.f32.mrf.mxu0
    %v1118 = vadd.f32 0.0, %v1117
    %1119 = vdwg.mxu0
    %v1120 = vand.u32 %v1070, 4294901760
    %v1121 = vsub.f32 %v1070, %v1120
    %v1122 = vand.u32 %v1121, 4294901760
    %v1123 = vsub.f32 %v1121, %v1122
    %v1124 = vand.u32 %v1123, 4294901760
    %1125 = vmatpush.msra.mxu0 %v1124
    %v1126 = vand.u32 %v1069, 4294901760
    %v1127 = vsub.f32 %v1069, %v1126
    %v1128 = vand.u32 %v1127, 4294901760
    %v1129 = vsub.f32 %v1127, %v1128
    %v1130 = vand.u32 %v1129, 4294901760
    %1131 = vmatpush.msra.mxu0 %v1130
    %v1132 = vand.u32 %v1068, 4294901760
    %v1133 = vsub.f32 %v1068, %v1132
    %v1134 = vand.u32 %v1133, 4294901760
    %v1135 = vsub.f32 %v1133, %v1134
    %v1136 = vand.u32 %v1135, 4294901760
    %1137 = vmatpush.msra.mxu0 %v1136
    %v1138 = vand.u32 %v1067, 4294901760
    %v1139 = vsub.f32 %v1067, %v1138
    %v1140 = vand.u32 %v1139, 4294901760
    %v1141 = vsub.f32 %v1139, %v1140
    %v1142 = vand.u32 %v1141, 4294901760
    %1143 = vmatpush.msra.mxu0 %v1142
    %v1144 = vand.u32 %v1066, 4294901760
    %v1145 = vsub.f32 %v1066, %v1144
    %v1146 = vand.u32 %v1145, 4294901760
    %v1147 = vsub.f32 %v1145, %v1146
    %v1148 = vand.u32 %v1147, 4294901760
    %1149 = vmatpush.msra.mxu0 %v1148
    %v1150 = vand.u32 %v1065, 4294901760
    %v1151 = vsub.f32 %v1065, %v1150
    %v1152 = vand.u32 %v1151, 4294901760
    %v1153 = vsub.f32 %v1151, %v1152
    %v1154 = vand.u32 %v1153, 4294901760
    %1155 = vmatpush.msra.mxu0 %v1154
    %v1156 = vand.u32 %v1064, 4294901760
    %v1157 = vsub.f32 %v1064, %v1156
    %v1158 = vand.u32 %v1157, 4294901760
    %v1159 = vsub.f32 %v1157, %v1158
    %v1160 = vand.u32 %v1159, 4294901760
    %1161 = vmatpush.msra.mxu0 %v1160
    %v1162 = vand.u32 %v1063, 4294901760
    %v1163 = vsub.f32 %v1063, %v1162
    %v1164 = vand.u32 %v1163, 4294901760
    %v1165 = vsub.f32 %v1163, %v1164
    %v1166 = vand.u32 %v1165, 4294901760
    %1167 = vmatpush.msra.mxu0 %v1166
    %v1168 = vand.u32 %v1062, 4294901760
    %v1169 = vsub.f32 %v1062, %v1168
    %v1170 = vand.u32 %v1169, 4294901760
    %v1171 = vsub.f32 %v1169, %v1170
    %v1172 = vand.u32 %v1171, 4294901760
    %1173 = vmatpush.msra.mxu0 %v1172
    %v1174 = vand.u32 %v1061, 4294901760
    %v1175 = vsub.f32 %v1061, %v1174
    %v1176 = vand.u32 %v1175, 4294901760
    %v1177 = vsub.f32 %v1175, %v1176
    %v1178 = vand.u32 %v1177, 4294901760
    %1179 = vmatpush.msra.mxu0 %v1178
    %v1180 = vand.u32 %v1060, 4294901760
    %v1181 = vsub.f32 %v1060, %v1180
    %v1182 = vand.u32 %v1181, 4294901760
    %v1183 = vsub.f32 %v1181, %v1182
    %v1184 = vand.u32 %v1183, 4294901760
    %1185 = vmatpush.msra.mxu0 %v1184
    %v1186 = vand.u32 %v1059, 4294901760
    %v1187 = vsub.f32 %v1059, %v1186
    %v1188 = vand.u32 %v1187, 4294901760
    %v1189 = vsub.f32 %v1187, %v1188
    %v1190 = vand.u32 %v1189, 4294901760
    %1191 = vmatpush.msra.mxu0 %v1190
    %v1192 = vand.u32 %v1058, 4294901760
    %v1193 = vsub.f32 %v1058, %v1192
    %v1194 = vand.u32 %v1193, 4294901760
    %v1195 = vsub.f32 %v1193, %v1194
    %v1196 = vand.u32 %v1195, 4294901760
    %1197 = vmatpush.msra.mxu0 %v1196
    %v1198 = vand.u32 %v1057, 4294901760
    %v1199 = vsub.f32 %v1057, %v1198
    %v1200 = vand.u32 %v1199, 4294901760
    %v1201 = vsub.f32 %v1199, %v1200
    %v1202 = vand.u32 %v1201, 4294901760
    %1203 = vmatpush.msra.mxu0 %v1202
    %v1204 = vand.u32 %v1056, 4294901760
    %v1205 = vsub.f32 %v1056, %v1204
    %v1206 = vand.u32 %v1205, 4294901760
    %v1207 = vsub.f32 %v1205, %v1206
    %v1208 = vand.u32 %v1207, 4294901760
    %1209 = vmatpush.msra.mxu0 %v1208
    %v1210 = vand.u32 %v1055, 4294901760
    %v1211 = vsub.f32 %v1055, %v1210
    %v1212 = vand.u32 %v1211, 4294901760
    %v1213 = vsub.f32 %v1211, %v1212
    %v1214 = vand.u32 %v1213, 4294901760
    %1215 = vmatpush.msra.mxu0 %v1214
    %v1216 = vand.u32 %v1053, 4294901760
    %1217 = vmatmul.f32.gmra.mxu0 %v1216
    %v1218 = vpop.f32.mrf.mxu0
    %v1219 = vadd.f32 %v1110, %v1218
    %v1220 = vand.u32 %v1054, 4294901760
    %1221 = vmatmul.f32.gmra.mxu0 %v1220
    %v1222 = vpop.f32.mrf.mxu0
    %v1223 = vadd.f32 %v1118, %v1222
    %1224 = vdwg.mxu0
    %v1225 = vand.u32 %v1070, 4294901760
    %v1226 = vsub.f32 %v1070, %v1225
    %1227 = vmatpush.msra.mxu0 %v1226
    %v1228 = vand.u32 %v1069, 4294901760
    %v1229 = vsub.f32 %v1069, %v1228
    %1230 = vmatpush.msra.mxu0 %v1229
    %v1231 = vand.u32 %v1068, 4294901760
    %v1232 = vsub.f32 %v1068, %v1231
    %1233 = vmatpush.msra.mxu0 %v1232
    %v1234 = vand.u32 %v1067, 4294901760
    %v1235 = vsub.f32 %v1067, %v1234
    %1236 = vmatpush.msra.mxu0 %v1235
    %v1237 = vand.u32 %v1066, 4294901760
    %v1238 = vsub.f32 %v1066, %v1237
    %1239 = vmatpush.msra.mxu0 %v1238
    %v1240 = vand.u32 %v1065, 4294901760
    %v1241 = vsub.f32 %v1065, %v1240
    %1242 = vmatpush.msra.mxu0 %v1241
    %v1243 = vand.u32 %v1064, 4294901760
    %v1244 = vsub.f32 %v1064, %v1243
    %1245 = vmatpush.msra.mxu0 %v1244
    %v1246 = vand.u32 %v1063, 4294901760
    %v1247 = vsub.f32 %v1063, %v1246
    %1248 = vmatpush.msra.mxu0 %v1247
    %v1249 = vand.u32 %v1062, 4294901760
    %v1250 = vsub.f32 %v1062, %v1249
    %1251 = vmatpush.msra.mxu0 %v1250
    %v1252 = vand.u32 %v1061, 4294901760
    %v1253 = vsub.f32 %v1061, %v1252
    %1254 = vmatpush.msra.mxu0 %v1253
    %v1255 = vand.u32 %v1060, 4294901760
    %v1256 = vsub.f32 %v1060, %v1255
    %1257 = vmatpush.msra.mxu0 %v1256
    %v1258 = vand.u32 %v1059, 4294901760
    %v1259 = vsub.f32 %v1059, %v1258
    %1260 = vmatpush.msra.mxu0 %v1259
    %v1261 = vand.u32 %v1058, 4294901760
    %v1262 = vsub.f32 %v1058, %v1261
    %1263 = vmatpush.msra.mxu0 %v1262
    %v1264 = vand.u32 %v1057, 4294901760
    %v1265 = vsub.f32 %v1057, %v1264
    %1266 = vmatpush.msra.mxu0 %v1265
    %v1267 = vand.u32 %v1056, 4294901760
    %v1268 = vsub.f32 %v1056, %v1267
    %1269 = vmatpush.msra.mxu0 %v1268
    %v1270 = vand.u32 %v1055, 4294901760
    %v1271 = vsub.f32 %v1055, %v1270
    %1272 = vmatpush.msra.mxu0 %v1271
    %v1273 = vand.u32 %v1053, 4294901760
    %v1274 = vsub.f32 %v1053, %v1273
    %1275 = vmatmul.f32.gmra.mxu0 %v1274
    %v1276 = vpop.f32.mrf.mxu0
    %v1277 = vadd.f32 %v1219, %v1276
    %v1278 = vand.u32 %v1054, 4294901760
    %v1279 = vsub.f32 %v1054, %v1278
    %1280 = vmatmul.f32.gmra.mxu0 %v1279
    %v1281 = vpop.f32.mrf.mxu0
    %v1282 = vadd.f32 %v1223, %v1281
    %1283 = vdwg.mxu0
    %v1284 = vand.u32 %v1070, 4294901760
    %1285 = vmatpush.msra.mxu0 %v1284
    %v1286 = vand.u32 %v1069, 4294901760
    %1287 = vmatpush.msra.mxu0 %v1286
    %v1288 = vand.u32 %v1068, 4294901760
    %1289 = vmatpush.msra.mxu0 %v1288
    %v1290 = vand.u32 %v1067, 4294901760
    %1291 = vmatpush.msra.mxu0 %v1290
    %v1292 = vand.u32 %v1066, 4294901760
    %1293 = vmatpush.msra.mxu0 %v1292
    %v1294 = vand.u32 %v1065, 4294901760
    %1295 = vmatpush.msra.mxu0 %v1294
    %v1296 = vand.u32 %v1064, 4294901760
    %1297 = vmatpush.msra.mxu0 %v1296
    %v1298 = vand.u32 %v1063, 4294901760
    %1299 = vmatpush.msra.mxu0 %v1298
    %v1300 = vand.u32 %v1062, 4294901760
    %1301 = vmatpush.msra.mxu0 %v1300
    %v1302 = vand.u32 %v1061, 4294901760
    %1303 = vmatpush.msra.mxu0 %v1302
    %v1304 = vand.u32 %v1060, 4294901760
    %1305 = vmatpush.msra.mxu0 %v1304
    %v1306 = vand.u32 %v1059, 4294901760
    %1307 = vmatpush.msra.mxu0 %v1306
    %v1308 = vand.u32 %v1058, 4294901760
    %1309 = vmatpush.msra.mxu0 %v1308
    %v1310 = vand.u32 %v1057, 4294901760
    %1311 = vmatpush.msra.mxu0 %v1310
    %v1312 = vand.u32 %v1056, 4294901760
    %1313 = vmatpush.msra.mxu0 %v1312
    %v1314 = vand.u32 %v1055, 4294901760
    %1315 = vmatpush.msra.mxu0 %v1314
    %v1316 = vand.u32 %v1053, 4294901760
    %v1317 = vsub.f32 %v1053, %v1316
    %v1318 = vand.u32 %v1317, 4294901760
    %1319 = vmatmul.f32.gmra.mxu0 %v1318
    %v1320 = vpop.f32.mrf.mxu0
    %v1321 = vadd.f32 %v1277, %v1320
    %v1322 = vand.u32 %v1054, 4294901760
    %v1323 = vsub.f32 %v1054, %v1322
    %v1324 = vand.u32 %v1323, 4294901760
    %1325 = vmatmul.f32.gmra.mxu0 %v1324
    %v1326 = vpop.f32.mrf.mxu0
    %v1327 = vadd.f32 %v1282, %v1326
    %1328 = vdwg.mxu0
    %v1329 = vand.u32 %v1070, 4294901760
    %v1330 = vsub.f32 %v1070, %v1329
    %v1331 = vand.u32 %v1330, 4294901760
    %1332 = vmatpush.msra.mxu0 %v1331
    %v1333 = vand.u32 %v1069, 4294901760
    %v1334 = vsub.f32 %v1069, %v1333
    %v1335 = vand.u32 %v1334, 4294901760
    %1336 = vmatpush.msra.mxu0 %v1335
    %v1337 = vand.u32 %v1068, 4294901760
    %v1338 = vsub.f32 %v1068, %v1337
    %v1339 = vand.u32 %v1338, 4294901760
    %1340 = vmatpush.msra.mxu0 %v1339
    %v1341 = vand.u32 %v1067, 4294901760
    %v1342 = vsub.f32 %v1067, %v1341
    %v1343 = vand.u32 %v1342, 4294901760
    %1344 = vmatpush.msra.mxu0 %v1343
    %v1345 = vand.u32 %v1066, 4294901760
    %v1346 = vsub.f32 %v1066, %v1345
    %v1347 = vand.u32 %v1346, 4294901760
    %1348 = vmatpush.msra.mxu0 %v1347
    %v1349 = vand.u32 %v1065, 4294901760
    %v1350 = vsub.f32 %v1065, %v1349
    %v1351 = vand.u32 %v1350, 4294901760
    %1352 = vmatpush.msra.mxu0 %v1351
    %v1353 = vand.u32 %v1064, 4294901760
    %v1354 = vsub.f32 %v1064, %v1353
    %v1355 = vand.u32 %v1354, 4294901760
    %1356 = vmatpush.msra.mxu0 %v1355
    %v1357 = vand.u32 %v1063, 4294901760
    %v1358 = vsub.f32 %v1063, %v1357
    %v1359 = vand.u32 %v1358, 4294901760
    %1360 = vmatpush.msra.mxu0 %v1359
    %v1361 = vand.u32 %v1062, 4294901760
    %v1362 = vsub.f32 %v1062, %v1361
    %v1363 = vand.u32 %v1362, 4294901760
    %1364 = vmatpush.msra.mxu0 %v1363
    %v1365 = vand.u32 %v1061, 4294901760
    %v1366 = vsub.f32 %v1061, %v1365
    %v1367 = vand.u32 %v1366, 4294901760
    %1368 = vmatpush.msra.mxu0 %v1367
    %v1369 = vand.u32 %v1060, 4294901760
    %v1370 = vsub.f32 %v1060, %v1369
    %v1371 = vand.u32 %v1370, 4294901760
    %1372 = vmatpush.msra.mxu0 %v1371
    %v1373 = vand.u32 %v1059, 4294901760
    %v1374 = vsub.f32 %v1059, %v1373
    %v1375 = vand.u32 %v1374, 4294901760
    %1376 = vmatpush.msra.mxu0 %v1375
    %v1377 = vand.u32 %v1058, 4294901760
    %v1378 = vsub.f32 %v1058, %v1377
    %v1379 = vand.u32 %v1378, 4294901760
    %1380 = vmatpush.msra.mxu0 %v1379
    %v1381 = vand.u32 %v1057, 4294901760
    %v1382 = vsub.f32 %v1057, %v1381
    %v1383 = vand.u32 %v1382, 4294901760
    %1384 = vmatpush.msra.mxu0 %v1383
    %v1385 = vand.u32 %v1056, 4294901760
    %v1386 = vsub.f32 %v1056, %v1385
    %v1387 = vand.u32 %v1386, 4294901760
    %1388 = vmatpush.msra.mxu0 %v1387
    %v1389 = vand.u32 %v1055, 4294901760
    %v1390 = vsub.f32 %v1055, %v1389
    %v1391 = vand.u32 %v1390, 4294901760
    %1392 = vmatpush.msra.mxu0 %v1391
    %v1393 = vand.u32 %v1053, 4294901760
    %1394 = vmatmul.f32.gmra.mxu0 %v1393
    %v1395 = vpop.f32.mrf.mxu0
    %v1396 = vadd.f32 %v1321, %v1395
    %v1397 = vand.u32 %v1054, 4294901760
    %1398 = vmatmul.f32.gmra.mxu0 %v1397
    %v1399 = vpop.f32.mrf.mxu0
    %v1400 = vadd.f32 %v1327, %v1399
    %1401 = vdwg.mxu0
    %v1402 = vand.u32 %v1070, 4294901760
    %1403 = vmatpush.msra.mxu0 %v1402
    %v1404 = vand.u32 %v1069, 4294901760
    %1405 = vmatpush.msra.mxu0 %v1404
    %v1406 = vand.u32 %v1068, 4294901760
    %1407 = vmatpush.msra.mxu0 %v1406
    %v1408 = vand.u32 %v1067, 4294901760
    %1409 = vmatpush.msra.mxu0 %v1408
    %v1410 = vand.u32 %v1066, 4294901760
    %1411 = vmatpush.msra.mxu0 %v1410
    %v1412 = vand.u32 %v1065, 4294901760
    %1413 = vmatpush.msra.mxu0 %v1412
    %v1414 = vand.u32 %v1064, 4294901760
    %1415 = vmatpush.msra.mxu0 %v1414
    %v1416 = vand.u32 %v1063, 4294901760
    %1417 = vmatpush.msra.mxu0 %v1416
    %v1418 = vand.u32 %v1062, 4294901760
    %1419 = vmatpush.msra.mxu0 %v1418
    %v1420 = vand.u32 %v1061, 4294901760
    %1421 = vmatpush.msra.mxu0 %v1420
    %v1422 = vand.u32 %v1060, 4294901760
    %1423 = vmatpush.msra.mxu0 %v1422
    %v1424 = vand.u32 %v1059, 4294901760
    %1425 = vmatpush.msra.mxu0 %v1424
    %v1426 = vand.u32 %v1058, 4294901760
    %1427 = vmatpush.msra.mxu0 %v1426
    %v1428 = vand.u32 %v1057, 4294901760
    %1429 = vmatpush.msra.mxu0 %v1428
    %v1430 = vand.u32 %v1056, 4294901760
    %1431 = vmatpush.msra.mxu0 %v1430
    %v1432 = vand.u32 %v1055, 4294901760
    %1433 = vmatpush.msra.mxu0 %v1432
    %v1434 = vand.u32 %v1053, 4294901760
    %1435 = vmatmul.f32.gmra.mxu0 %v1434
    %v1436 = vpop.f32.mrf.mxu0
    %v1437 = vadd.f32 %v1396, %v1436
    %v1438 = vand.u32 %v1054, 4294901760
    %1439 = vmatmul.f32.gmra.mxu0 %v1438
    %v1440 = vpop.f32.mrf.mxu0
    %v1441 = vadd.f32 %v1400, %v1440
    %1442 = vdwg.mxu0
    %v1443 = vld [vmem:[%s3] sm:$0xff]
    %v1444 = vld [vmem:[%s3 + $0x8] sm:$0xf]
    %s1445 = scalar_lea.vmem %s3, 16
    %v1446 = vld [vmem:[%s1445] sm:$0xff]
    %v1447 = vld [vmem:[%s1445 + $0x8] sm:$0xf]
    %1450 = vrot.lane.b32.xlu0 %v1437, 127
    %v1451 = vpop.permute.xlu0 %1450
    %1452 = vrot.lane.b32.xlu0 %v1441, 127
    %v1453 = vpop.permute.xlu0 %1452
    %vm1456 = vcmask 187392
    %v1457 = vsel %vm1456, %v1451, 0.0
    %v1458 = vsel %vm1456, %v1453, 0.0
    %vm1459 = vcmask 97280
    %v1461 = vsel %vm1459, %v1446, 0
    %v1464 = vsel %vm1459, %v1447, 0
    %v1467 = vsel %vm43, %v1458, 0
    %1469 = vmatpush.msra.mxu0 0.0
    %1470 = vmatpush.msra.mxu0 0.0
    %1471 = vmatpush.msra.mxu0 0.0
    %1472 = vmatpush.msra.mxu0 0.0
    %1473 = vmatpush.msra.mxu0 0.0
    %1474 = vmatpush.msra.mxu0 0.0
    %1475 = vmatpush.msra.mxu0 0.0
    %1476 = vmatpush.msra.mxu0 0.0
    %1477 = vmatpush.msra.mxu0 0.0
    %1478 = vmatpush.msra.mxu0 0.0
    %1479 = vmatpush.msra.mxu0 0.0
    %1480 = vmatpush.msra.mxu0 0.0
    %1481 = vmatpush.msra.mxu0 0.0
    %1482 = vmatpush.msra.mxu0 0.0
    %v1483 = vand.u32 %v1467, 4294901760
    %1484 = vmatpush.msra.mxu0 %v1483
    %v1485 = vand.u32 %v1457, 4294901760
    %1486 = vmatpush.msra.mxu0 %v1485
    %v1487 = vand.u32 %v1461, 4294901760
    %v1488 = vsub.f32 %v1461, %v1487
    %v1489 = vand.u32 %v1488, 4294901760
    %v1490 = vsub.f32 %v1488, %v1489
    %v1491 = vand.u32 %v1490, 4294901760
    %1492 = vmatmul.f32.gmra.mxu0 %v1491
    %v1493 = vpop.f32.mrf.mxu0
    %v1494 = vadd.f32 0.0, %v1493
    %v1495 = vand.u32 %v1464, 4294901760
    %v1496 = vsub.f32 %v1464, %v1495
    %v1497 = vand.u32 %v1496, 4294901760
    %v1498 = vsub.f32 %v1496, %v1497
    %v1499 = vand.u32 %v1498, 4294901760
    %1500 = vmatmul.f32.gmra.mxu0 %v1499
    %v1501 = vpop.f32.mrf.mxu0
    %v1502 = vadd.f32 0.0, %v1501
    %1503 = vdwg.mxu0
    %1504 = vmatpush.msra.mxu0 0.0
    %1505 = vmatpush.msra.mxu0 0.0
    %1506 = vmatpush.msra.mxu0 0.0
    %1507 = vmatpush.msra.mxu0 0.0
    %1508 = vmatpush.msra.mxu0 0.0
    %1509 = vmatpush.msra.mxu0 0.0
    %1510 = vmatpush.msra.mxu0 0.0
    %1511 = vmatpush.msra.mxu0 0.0
    %1512 = vmatpush.msra.mxu0 0.0
    %1513 = vmatpush.msra.mxu0 0.0
    %1514 = vmatpush.msra.mxu0 0.0
    %1515 = vmatpush.msra.mxu0 0.0
    %1516 = vmatpush.msra.mxu0 0.0
    %1517 = vmatpush.msra.mxu0 0.0
    %v1518 = vand.u32 %v1467, 4294901760
    %v1519 = vsub.f32 %v1467, %v1518
    %v1520 = vand.u32 %v1519, 4294901760
    %v1521 = vsub.f32 %v1519, %v1520
    %v1522 = vand.u32 %v1521, 4294901760
    %1523 = vmatpush.msra.mxu0 %v1522
    %v1524 = vand.u32 %v1457, 4294901760
    %v1525 = vsub.f32 %v1457, %v1524
    %v1526 = vand.u32 %v1525, 4294901760
    %v1527 = vsub.f32 %v1525, %v1526
    %v1528 = vand.u32 %v1527, 4294901760
    %1529 = vmatpush.msra.mxu0 %v1528
    %v1530 = vand.u32 %v1461, 4294901760
    %1531 = vmatmul.f32.gmra.mxu0 %v1530
    %v1532 = vpop.f32.mrf.mxu0
    %v1533 = vadd.f32 %v1494, %v1532
    %v1534 = vand.u32 %v1464, 4294901760
    %1535 = vmatmul.f32.gmra.mxu0 %v1534
    %v1536 = vpop.f32.mrf.mxu0
    %v1537 = vadd.f32 %v1502, %v1536
    %1538 = vdwg.mxu0
    %1539 = vmatpush.msra.mxu0 0.0
    %1540 = vmatpush.msra.mxu0 0.0
    %1541 = vmatpush.msra.mxu0 0.0
    %1542 = vmatpush.msra.mxu0 0.0
    %1543 = vmatpush.msra.mxu0 0.0
    %1544 = vmatpush.msra.mxu0 0.0
    %1545 = vmatpush.msra.mxu0 0.0
    %1546 = vmatpush.msra.mxu0 0.0
    %1547 = vmatpush.msra.mxu0 0.0
    %1548 = vmatpush.msra.mxu0 0.0
    %1549 = vmatpush.msra.mxu0 0.0
    %1550 = vmatpush.msra.mxu0 0.0
    %1551 = vmatpush.msra.mxu0 0.0
    %1552 = vmatpush.msra.mxu0 0.0
    %v1553 = vand.u32 %v1467, 4294901760
    %v1554 = vsub.f32 %v1467, %v1553
    %1555 = vmatpush.msra.mxu0 %v1554
    %v1556 = vand.u32 %v1457, 4294901760
    %v1557 = vsub.f32 %v1457, %v1556
    %1558 = vmatpush.msra.mxu0 %v1557
    %v1559 = vand.u32 %v1461, 4294901760
    %v1560 = vsub.f32 %v1461, %v1559
    %1561 = vmatmul.f32.gmra.mxu0 %v1560
    %v1562 = vpop.f32.mrf.mxu0
    %v1563 = vadd.f32 %v1533, %v1562
    %v1564 = vand.u32 %v1464, 4294901760
    %v1565 = vsub.f32 %v1464, %v1564
    %1566 = vmatmul.f32.gmra.mxu0 %v1565
    %v1567 = vpop.f32.mrf.mxu0
    %v1568 = vadd.f32 %v1537, %v1567
    %1569 = vdwg.mxu0
    %1570 = vmatpush.msra.mxu0 0.0
    %1571 = vmatpush.msra.mxu0 0.0
    %1572 = vmatpush.msra.mxu0 0.0
    %1573 = vmatpush.msra.mxu0 0.0
    %1574 = vmatpush.msra.mxu0 0.0
    %1575 = vmatpush.msra.mxu0 0.0
    %1576 = vmatpush.msra.mxu0 0.0
    %1577 = vmatpush.msra.mxu0 0.0
    %1578 = vmatpush.msra.mxu0 0.0
    %1579 = vmatpush.msra.mxu0 0.0
    %1580 = vmatpush.msra.mxu0 0.0
    %1581 = vmatpush.msra.mxu0 0.0
    %1582 = vmatpush.msra.mxu0 0.0
    %1583 = vmatpush.msra.mxu0 0.0
    %v1584 = vand.u32 %v1467, 4294901760
    %1585 = vmatpush.msra.mxu0 %v1584
    %v1586 = vand.u32 %v1457, 4294901760
    %1587 = vmatpush.msra.mxu0 %v1586
    %v1588 = vand.u32 %v1461, 4294901760
    %v1589 = vsub.f32 %v1461, %v1588
    %v1590 = vand.u32 %v1589, 4294901760
    %1591 = vmatmul.f32.gmra.mxu0 %v1590
    %v1592 = vpop.f32.mrf.mxu0
    %v1593 = vadd.f32 %v1563, %v1592
    %v1594 = vand.u32 %v1464, 4294901760
    %v1595 = vsub.f32 %v1464, %v1594
    %v1596 = vand.u32 %v1595, 4294901760
    %1597 = vmatmul.f32.gmra.mxu0 %v1596
    %v1598 = vpop.f32.mrf.mxu0
    %v1599 = vadd.f32 %v1568, %v1598
    %1600 = vdwg.mxu0
    %1601 = vmatpush.msra.mxu0 0.0
    %1602 = vmatpush.msra.mxu0 0.0
    %1603 = vmatpush.msra.mxu0 0.0
    %1604 = vmatpush.msra.mxu0 0.0
    %1605 = vmatpush.msra.mxu0 0.0
    %1606 = vmatpush.msra.mxu0 0.0
    %1607 = vmatpush.msra.mxu0 0.0
    %1608 = vmatpush.msra.mxu0 0.0
    %1609 = vmatpush.msra.mxu0 0.0
    %1610 = vmatpush.msra.mxu0 0.0
    %1611 = vmatpush.msra.mxu0 0.0
    %1612 = vmatpush.msra.mxu0 0.0
    %1613 = vmatpush.msra.mxu0 0.0
    %1614 = vmatpush.msra.mxu0 0.0
    %v1615 = vand.u32 %v1467, 4294901760
    %v1616 = vsub.f32 %v1467, %v1615
    %v1617 = vand.u32 %v1616, 4294901760
    %1618 = vmatpush.msra.mxu0 %v1617
    %v1619 = vand.u32 %v1457, 4294901760
    %v1620 = vsub.f32 %v1457, %v1619
    %v1621 = vand.u32 %v1620, 4294901760
    %1622 = vmatpush.msra.mxu0 %v1621
    %v1623 = vand.u32 %v1461, 4294901760
    %1624 = vmatmul.f32.gmra.mxu0 %v1623
    %v1625 = vpop.f32.mrf.mxu0
    %v1626 = vadd.f32 %v1593, %v1625
    %v1627 = vand.u32 %v1464, 4294901760
    %1628 = vmatmul.f32.gmra.mxu0 %v1627
    %v1629 = vpop.f32.mrf.mxu0
    %v1630 = vadd.f32 %v1599, %v1629
    %1631 = vdwg.mxu0
    %1632 = vmatpush.msra.mxu0 0.0
    %1633 = vmatpush.msra.mxu0 0.0
    %1634 = vmatpush.msra.mxu0 0.0
    %1635 = vmatpush.msra.mxu0 0.0
    %1636 = vmatpush.msra.mxu0 0.0
    %1637 = vmatpush.msra.mxu0 0.0
    %1638 = vmatpush.msra.mxu0 0.0
    %1639 = vmatpush.msra.mxu0 0.0
    %1640 = vmatpush.msra.mxu0 0.0
    %1641 = vmatpush.msra.mxu0 0.0
    %1642 = vmatpush.msra.mxu0 0.0
    %1643 = vmatpush.msra.mxu0 0.0
    %1644 = vmatpush.msra.mxu0 0.0
    %1645 = vmatpush.msra.mxu0 0.0
    %v1646 = vand.u32 %v1467, 4294901760
    %1647 = vmatpush.msra.mxu0 %v1646
    %v1648 = vand.u32 %v1457, 4294901760
    %1649 = vmatpush.msra.mxu0 %v1648
    %v1650 = vand.u32 %v1461, 4294901760
    %1651 = vmatmul.f32.gmra.mxu0 %v1650
    %v1652 = vpop.f32.mrf.mxu0
    %v1653 = vadd.f32 %v1626, %v1652
    %v1654 = vand.u32 %v1464, 4294901760
    %1655 = vmatmul.f32.gmra.mxu0 %v1654
    %v1656 = vpop.f32.mrf.mxu0
    %v1657 = vadd.f32 %v1630, %v1656
    %1658 = vdwg.mxu0
    %v1660 = vsel %vm1459, %v1443, 0
    %v1663 = vsel %vm1459, %v1444, 0
    %v1665 = vsel %vm43, %v1441, 0
    %1667 = vmatpush.msra.mxu0 0.0
    %1668 = vmatpush.msra.mxu0 0.0
    %1669 = vmatpush.msra.mxu0 0.0
    %1670 = vmatpush.msra.mxu0 0.0
    %1671 = vmatpush.msra.mxu0 0.0
    %1672 = vmatpush.msra.mxu0 0.0
    %1673 = vmatpush.msra.mxu0 0.0
    %1674 = vmatpush.msra.mxu0 0.0
    %1675 = vmatpush.msra.mxu0 0.0
    %1676 = vmatpush.msra.mxu0 0.0
    %1677 = vmatpush.msra.mxu0 0.0
    %1678 = vmatpush.msra.mxu0 0.0
    %1679 = vmatpush.msra.mxu0 0.0
    %1680 = vmatpush.msra.mxu0 0.0
    %v1681 = vand.u32 %v1665, 4294901760
    %1682 = vmatpush.msra.mxu0 %v1681
    %v1683 = vand.u32 %v1437, 4294901760
    %1684 = vmatpush.msra.mxu0 %v1683
    %v1685 = vand.u32 %v1660, 4294901760
    %v1686 = vsub.f32 %v1660, %v1685
    %v1687 = vand.u32 %v1686, 4294901760
    %v1688 = vsub.f32 %v1686, %v1687
    %v1689 = vand.u32 %v1688, 4294901760
    %1690 = vmatmul.f32.gmra.mxu0 %v1689
    %v1691 = vpop.f32.mrf.mxu0
    %v1692 = vadd.f32 %v1653, %v1691
    %v1693 = vand.u32 %v1663, 4294901760
    %v1694 = vsub.f32 %v1663, %v1693
    %v1695 = vand.u32 %v1694, 4294901760
    %v1696 = vsub.f32 %v1694, %v1695
    %v1697 = vand.u32 %v1696, 4294901760
    %1698 = vmatmul.f32.gmra.mxu0 %v1697
    %v1699 = vpop.f32.mrf.mxu0
    %v1700 = vadd.f32 %v1657, %v1699
    %1701 = vdwg.mxu0
    %1702 = vmatpush.msra.mxu0 0.0
    %1703 = vmatpush.msra.mxu0 0.0
    %1704 = vmatpush.msra.mxu0 0.0
    %1705 = vmatpush.msra.mxu0 0.0
    %1706 = vmatpush.msra.mxu0 0.0
    %1707 = vmatpush.msra.mxu0 0.0
    %1708 = vmatpush.msra.mxu0 0.0
    %1709 = vmatpush.msra.mxu0 0.0
    %1710 = vmatpush.msra.mxu0 0.0
    %1711 = vmatpush.msra.mxu0 0.0
    %1712 = vmatpush.msra.mxu0 0.0
    %1713 = vmatpush.msra.mxu0 0.0
    %1714 = vmatpush.msra.mxu0 0.0
    %1715 = vmatpush.msra.mxu0 0.0
    %v1716 = vand.u32 %v1665, 4294901760
    %v1717 = vsub.f32 %v1665, %v1716
    %v1718 = vand.u32 %v1717, 4294901760
    %v1719 = vsub.f32 %v1717, %v1718
    %v1720 = vand.u32 %v1719, 4294901760
    %1721 = vmatpush.msra.mxu0 %v1720
    %v1722 = vand.u32 %v1437, 4294901760
    %v1723 = vsub.f32 %v1437, %v1722
    %v1724 = vand.u32 %v1723, 4294901760
    %v1725 = vsub.f32 %v1723, %v1724
    %v1726 = vand.u32 %v1725, 4294901760
    %1727 = vmatpush.msra.mxu0 %v1726
    %v1728 = vand.u32 %v1660, 4294901760
    %1729 = vmatmul.f32.gmra.mxu0 %v1728
    %v1730 = vpop.f32.mrf.mxu0
    %v1731 = vadd.f32 %v1692, %v1730
    %v1732 = vand.u32 %v1663, 4294901760
    %1733 = vmatmul.f32.gmra.mxu0 %v1732
    %v1734 = vpop.f32.mrf.mxu0
    %v1735 = vadd.f32 %v1700, %v1734
    %1736 = vdwg.mxu0
    %1737 = vmatpush.msra.mxu0 0.0
    %1738 = vmatpush.msra.mxu0 0.0
    %1739 = vmatpush.msra.mxu0 0.0
    %1740 = vmatpush.msra.mxu0 0.0
    %1741 = vmatpush.msra.mxu0 0.0
    %1742 = vmatpush.msra.mxu0 0.0
    %1743 = vmatpush.msra.mxu0 0.0
    %1744 = vmatpush.msra.mxu0 0.0
    %1745 = vmatpush.msra.mxu0 0.0
    %1746 = vmatpush.msra.mxu0 0.0
    %1747 = vmatpush.msra.mxu0 0.0
    %1748 = vmatpush.msra.mxu0 0.0
    %1749 = vmatpush.msra.mxu0 0.0
    %1750 = vmatpush.msra.mxu0 0.0
    %v1751 = vand.u32 %v1665, 4294901760
    %v1752 = vsub.f32 %v1665, %v1751
    %1753 = vmatpush.msra.mxu0 %v1752
    %v1754 = vand.u32 %v1437, 4294901760
    %v1755 = vsub.f32 %v1437, %v1754
    %1756 = vmatpush.msra.mxu0 %v1755
    %v1757 = vand.u32 %v1660, 4294901760
    %v1758 = vsub.f32 %v1660, %v1757
    %1759 = vmatmul.f32.gmra.mxu0 %v1758
    %v1760 = vpop.f32.mrf.mxu0
    %v1761 = vadd.f32 %v1731, %v1760
    %v1762 = vand.u32 %v1663, 4294901760
    %v1763 = vsub.f32 %v1663, %v1762
    %1764 = vmatmul.f32.gmra.mxu0 %v1763
    %v1765 = vpop.f32.mrf.mxu0
    %v1766 = vadd.f32 %v1735, %v1765
    %1767 = vdwg.mxu0
    %1768 = vmatpush.msra.mxu0 0.0
    %1769 = vmatpush.msra.mxu0 0.0
    %1770 = vmatpush.msra.mxu0 0.0
    %1771 = vmatpush.msra.mxu0 0.0
    %1772 = vmatpush.msra.mxu0 0.0
    %1773 = vmatpush.msra.mxu0 0.0
    %1774 = vmatpush.msra.mxu0 0.0
    %1775 = vmatpush.msra.mxu0 0.0
    %1776 = vmatpush.msra.mxu0 0.0
    %1777 = vmatpush.msra.mxu0 0.0
    %1778 = vmatpush.msra.mxu0 0.0
    %1779 = vmatpush.msra.mxu0 0.0
    %1780 = vmatpush.msra.mxu0 0.0
    %1781 = vmatpush.msra.mxu0 0.0
    %v1782 = vand.u32 %v1665, 4294901760
    %1783 = vmatpush.msra.mxu0 %v1782
    %v1784 = vand.u32 %v1437, 4294901760
    %1785 = vmatpush.msra.mxu0 %v1784
    %v1786 = vand.u32 %v1660, 4294901760
    %v1787 = vsub.f32 %v1660, %v1786
    %v1788 = vand.u32 %v1787, 4294901760
    %1789 = vmatmul.f32.gmra.mxu0 %v1788
    %v1790 = vpop.f32.mrf.mxu0
    %v1791 = vadd.f32 %v1761, %v1790
    %v1792 = vand.u32 %v1663, 4294901760
    %v1793 = vsub.f32 %v1663, %v1792
    %v1794 = vand.u32 %v1793, 4294901760
    %1795 = vmatmul.f32.gmra.mxu0 %v1794
    %v1796 = vpop.f32.mrf.mxu0
    %v1797 = vadd.f32 %v1766, %v1796
    %1798 = vdwg.mxu0
    %1799 = vmatpush.msra.mxu0 0.0
    %1800 = vmatpush.msra.mxu0 0.0
    %1801 = vmatpush.msra.mxu0 0.0
    %1802 = vmatpush.msra.mxu0 0.0
    %1803 = vmatpush.msra.mxu0 0.0
    %1804 = vmatpush.msra.mxu0 0.0
    %1805 = vmatpush.msra.mxu0 0.0
    %1806 = vmatpush.msra.mxu0 0.0
    %1807 = vmatpush.msra.mxu0 0.0
    %1808 = vmatpush.msra.mxu0 0.0
    %1809 = vmatpush.msra.mxu0 0.0
    %1810 = vmatpush.msra.mxu0 0.0
    %1811 = vmatpush.msra.mxu0 0.0
    %1812 = vmatpush.msra.mxu0 0.0
    %v1813 = vand.u32 %v1665, 4294901760
    %v1814 = vsub.f32 %v1665, %v1813
    %v1815 = vand.u32 %v1814, 4294901760
    %1816 = vmatpush.msra.mxu0 %v1815
    %v1817 = vand.u32 %v1437, 4294901760
    %v1818 = vsub.f32 %v1437, %v1817
    %v1819 = vand.u32 %v1818, 4294901760
    %1820 = vmatpush.msra.mxu0 %v1819
    %v1821 = vand.u32 %v1660, 4294901760
    %1822 = vmatmul.f32.gmra.mxu0 %v1821
    %v1823 = vpop.f32.mrf.mxu0
    %v1824 = vadd.f32 %v1791, %v1823
    %v1825 = vand.u32 %v1663, 4294901760
    %1826 = vmatmul.f32.gmra.mxu0 %v1825
    %v1827 = vpop.f32.mrf.mxu0
    %v1828 = vadd.f32 %v1797, %v1827
    %1829 = vdwg.mxu0
    %1830 = vmatpush.msra.mxu0 0.0
    %1831 = vmatpush.msra.mxu0 0.0
    %1832 = vmatpush.msra.mxu0 0.0
    %1833 = vmatpush.msra.mxu0 0.0
    %1834 = vmatpush.msra.mxu0 0.0
    %1835 = vmatpush.msra.mxu0 0.0
    %1836 = vmatpush.msra.mxu0 0.0
    %1837 = vmatpush.msra.mxu0 0.0
    %1838 = vmatpush.msra.mxu0 0.0
    %1839 = vmatpush.msra.mxu0 0.0
    %1840 = vmatpush.msra.mxu0 0.0
    %1841 = vmatpush.msra.mxu0 0.0
    %1842 = vmatpush.msra.mxu0 0.0
    %1843 = vmatpush.msra.mxu0 0.0
    %v1844 = vand.u32 %v1665, 4294901760
    %1845 = vmatpush.msra.mxu0 %v1844
    %v1846 = vand.u32 %v1437, 4294901760
    %1847 = vmatpush.msra.mxu0 %v1846
    %v1848 = vand.u32 %v1660, 4294901760
    %1849 = vmatmul.f32.gmra.mxu0 %v1848
    %v1850 = vpop.f32.mrf.mxu0
    %v1851 = vadd.f32 %v1824, %v1850
    %v1852 = vand.u32 %v1663, 4294901760
    %1853 = vmatmul.f32.gmra.mxu0 %v1852
    %v1854 = vpop.f32.mrf.mxu0
    %v1855 = vadd.f32 %v1828, %v1854
    %1856 = vdwg.mxu0
    %s1857 = scalar_lea.vmem %s3, 32
    %v1858 = vld [vmem:[%s1857] sm:$0xff]
    %v1859 = vld [vmem:[%s1857 + $0x8] sm:$0xf]
    %1860 = vrot.lane.b32.xlu0 %v1437, 126
    %v1861 = vpop.permute.xlu0 %1860
    %1862 = vrot.lane.b32.xlu0 %v1441, 126
    %v1863 = vpop.permute.xlu0 %1862
    %vm1866 = vcmask 179200
    %v1867 = vsel %vm1866, %v1861, 0.0
    %v1868 = vsel %vm1866, %v1863, 0.0
    %v1870 = vsel %vm1459, %v1858, 0
    %v1873 = vsel %vm1459, %v1859, 0
    %v1876 = vsel %vm43, %v1868, 0
    %1878 = vmatpush.msra.mxu0 0.0
    %1879 = vmatpush.msra.mxu0 0.0
    %1880 = vmatpush.msra.mxu0 0.0
    %1881 = vmatpush.msra.mxu0 0.0
    %1882 = vmatpush.msra.mxu0 0.0
    %1883 = vmatpush.msra.mxu0 0.0
    %1884 = vmatpush.msra.mxu0 0.0
    %1885 = vmatpush.msra.mxu0 0.0
    %1886 = vmatpush.msra.mxu0 0.0
    %1887 = vmatpush.msra.mxu0 0.0
    %1888 = vmatpush.msra.mxu0 0.0
    %1889 = vmatpush.msra.mxu0 0.0
    %1890 = vmatpush.msra.mxu0 0.0
    %1891 = vmatpush.msra.mxu0 0.0
    %v1892 = vand.u32 %v1876, 4294901760
    %1893 = vmatpush.msra.mxu0 %v1892
    %v1894 = vand.u32 %v1867, 4294901760
    %1895 = vmatpush.msra.mxu0 %v1894
    %v1896 = vand.u32 %v1870, 4294901760
    %v1897 = vsub.f32 %v1870, %v1896
    %v1898 = vand.u32 %v1897, 4294901760
    %v1899 = vsub.f32 %v1897, %v1898
    %v1900 = vand.u32 %v1899, 4294901760
    %1901 = vmatmul.f32.gmra.mxu0 %v1900
    %v1902 = vpop.f32.mrf.mxu0
    %v1903 = vadd.f32 0.0, %v1902
    %v1904 = vand.u32 %v1873, 4294901760
    %v1905 = vsub.f32 %v1873, %v1904
    %v1906 = vand.u32 %v1905, 4294901760
    %v1907 = vsub.f32 %v1905, %v1906
    %v1908 = vand.u32 %v1907, 4294901760
    %1909 = vmatmul.f32.gmra.mxu0 %v1908
    %v1910 = vpop.f32.mrf.mxu0
    %v1911 = vadd.f32 0.0, %v1910
    %1912 = vdwg.mxu0
    %1913 = vmatpush.msra.mxu0 0.0
    %1914 = vmatpush.msra.mxu0 0.0
    %1915 = vmatpush.msra.mxu0 0.0
    %1916 = vmatpush.msra.mxu0 0.0
    %1917 = vmatpush.msra.mxu0 0.0
    %1918 = vmatpush.msra.mxu0 0.0
    %1919 = vmatpush.msra.mxu0 0.0
    %1920 = vmatpush.msra.mxu0 0.0
    %1921 = vmatpush.msra.mxu0 0.0
    %1922 = vmatpush.msra.mxu0 0.0
    %1923 = vmatpush.msra.mxu0 0.0
    %1924 = vmatpush.msra.mxu0 0.0
    %1925 = vmatpush.msra.mxu0 0.0
    %1926 = vmatpush.msra.mxu0 0.0
    %v1927 = vand.u32 %v1876, 4294901760
    %v1928 = vsub.f32 %v1876, %v1927
    %v1929 = vand.u32 %v1928, 4294901760
    %v1930 = vsub.f32 %v1928, %v1929
    %v1931 = vand.u32 %v1930, 4294901760
    %1932 = vmatpush.msra.mxu0 %v1931
    %v1933 = vand.u32 %v1867, 4294901760
    %v1934 = vsub.f32 %v1867, %v1933
    %v1935 = vand.u32 %v1934, 4294901760
    %v1936 = vsub.f32 %v1934, %v1935
    %v1937 = vand.u32 %v1936, 4294901760
    %1938 = vmatpush.msra.mxu0 %v1937
    %v1939 = vand.u32 %v1870, 4294901760
    %1940 = vmatmul.f32.gmra.mxu0 %v1939
    %v1941 = vpop.f32.mrf.mxu0
    %v1942 = vadd.f32 %v1903, %v1941
    %v1943 = vand.u32 %v1873, 4294901760
    %1944 = vmatmul.f32.gmra.mxu0 %v1943
    %v1945 = vpop.f32.mrf.mxu0
    %v1946 = vadd.f32 %v1911, %v1945
    %1947 = vdwg.mxu0
    %1948 = vmatpush.msra.mxu0 0.0
    %1949 = vmatpush.msra.mxu0 0.0
    %1950 = vmatpush.msra.mxu0 0.0
    %1951 = vmatpush.msra.mxu0 0.0
    %1952 = vmatpush.msra.mxu0 0.0
    %1953 = vmatpush.msra.mxu0 0.0
    %1954 = vmatpush.msra.mxu0 0.0
    %1955 = vmatpush.msra.mxu0 0.0
    %1956 = vmatpush.msra.mxu0 0.0
    %1957 = vmatpush.msra.mxu0 0.0
    %1958 = vmatpush.msra.mxu0 0.0
    %1959 = vmatpush.msra.mxu0 0.0
    %1960 = vmatpush.msra.mxu0 0.0
    %1961 = vmatpush.msra.mxu0 0.0
    %v1962 = vand.u32 %v1876, 4294901760
    %v1963 = vsub.f32 %v1876, %v1962
    %1964 = vmatpush.msra.mxu0 %v1963
    %v1965 = vand.u32 %v1867, 4294901760
    %v1966 = vsub.f32 %v1867, %v1965
    %1967 = vmatpush.msra.mxu0 %v1966
    %v1968 = vand.u32 %v1870, 4294901760
    %v1969 = vsub.f32 %v1870, %v1968
    %1970 = vmatmul.f32.gmra.mxu0 %v1969
    %v1971 = vpop.f32.mrf.mxu0
    %v1972 = vadd.f32 %v1942, %v1971
    %v1973 = vand.u32 %v1873, 4294901760
    %v1974 = vsub.f32 %v1873, %v1973
    %1975 = vmatmul.f32.gmra.mxu0 %v1974
    %v1976 = vpop.f32.mrf.mxu0
    %v1977 = vadd.f32 %v1946, %v1976
    %1978 = vdwg.mxu0
    %1979 = vmatpush.msra.mxu0 0.0
    %1980 = vmatpush.msra.mxu0 0.0
    %1981 = vmatpush.msra.mxu0 0.0
    %1982 = vmatpush.msra.mxu0 0.0
    %1983 = vmatpush.msra.mxu0 0.0
    %1984 = vmatpush.msra.mxu0 0.0
    %1985 = vmatpush.msra.mxu0 0.0
    %1986 = vmatpush.msra.mxu0 0.0
    %1987 = vmatpush.msra.mxu0 0.0
    %1988 = vmatpush.msra.mxu0 0.0
    %1989 = vmatpush.msra.mxu0 0.0
    %1990 = vmatpush.msra.mxu0 0.0
    %1991 = vmatpush.msra.mxu0 0.0
    %1992 = vmatpush.msra.mxu0 0.0
    %v1993 = vand.u32 %v1876, 4294901760
    %1994 = vmatpush.msra.mxu0 %v1993
    %v1995 = vand.u32 %v1867, 4294901760
    %1996 = vmatpush.msra.mxu0 %v1995
    %v1997 = vand.u32 %v1870, 4294901760
    %v1998 = vsub.f32 %v1870, %v1997
    %v1999 = vand.u32 %v1998, 4294901760
    %2000 = vmatmul.f32.gmra.mxu0 %v1999
    %v2001 = vpop.f32.mrf.mxu0
    %v2002 = vadd.f32 %v1972, %v2001
    %v2003 = vand.u32 %v1873, 4294901760
    %v2004 = vsub.f32 %v1873, %v2003
    %v2005 = vand.u32 %v2004, 4294901760
    %2006 = vmatmul.f32.gmra.mxu0 %v2005
    %v2007 = vpop.f32.mrf.mxu0
    %v2008 = vadd.f32 %v1977, %v2007
    %2009 = vdwg.mxu0
    %2010 = vmatpush.msra.mxu0 0.0
    %2011 = vmatpush.msra.mxu0 0.0
    %2012 = vmatpush.msra.mxu0 0.0
    %2013 = vmatpush.msra.mxu0 0.0
    %2014 = vmatpush.msra.mxu0 0.0
    %2015 = vmatpush.msra.mxu0 0.0
    %2016 = vmatpush.msra.mxu0 0.0
    %2017 = vmatpush.msra.mxu0 0.0
    %2018 = vmatpush.msra.mxu0 0.0
    %2019 = vmatpush.msra.mxu0 0.0
    %2020 = vmatpush.msra.mxu0 0.0
    %2021 = vmatpush.msra.mxu0 0.0
    %2022 = vmatpush.msra.mxu0 0.0
    %2023 = vmatpush.msra.mxu0 0.0
    %v2024 = vand.u32 %v1876, 4294901760
    %v2025 = vsub.f32 %v1876, %v2024
    %v2026 = vand.u32 %v2025, 4294901760
    %2027 = vmatpush.msra.mxu0 %v2026
    %v2028 = vand.u32 %v1867, 4294901760
    %v2029 = vsub.f32 %v1867, %v2028
    %v2030 = vand.u32 %v2029, 4294901760
    %2031 = vmatpush.msra.mxu0 %v2030
    %v2032 = vand.u32 %v1870, 4294901760
    %2033 = vmatmul.f32.gmra.mxu0 %v2032
    %v2034 = vpop.f32.mrf.mxu0
    %v2035 = vadd.f32 %v2002, %v2034
    %v2036 = vand.u32 %v1873, 4294901760
    %2037 = vmatmul.f32.gmra.mxu0 %v2036
    %v2038 = vpop.f32.mrf.mxu0
    %v2039 = vadd.f32 %v2008, %v2038
    %2040 = vdwg.mxu0
    %2041 = vmatpush.msra.mxu0 0.0
    %2042 = vmatpush.msra.mxu0 0.0
    %2043 = vmatpush.msra.mxu0 0.0
    %2044 = vmatpush.msra.mxu0 0.0
    %2045 = vmatpush.msra.mxu0 0.0
    %2046 = vmatpush.msra.mxu0 0.0
    %2047 = vmatpush.msra.mxu0 0.0
    %2048 = vmatpush.msra.mxu0 0.0
    %2049 = vmatpush.msra.mxu0 0.0
    %2050 = vmatpush.msra.mxu0 0.0
    %2051 = vmatpush.msra.mxu0 0.0
    %2052 = vmatpush.msra.mxu0 0.0
    %2053 = vmatpush.msra.mxu0 0.0
    %2054 = vmatpush.msra.mxu0 0.0
    %v2055 = vand.u32 %v1876, 4294901760
    %2056 = vmatpush.msra.mxu0 %v2055
    %v2057 = vand.u32 %v1867, 4294901760
    %2058 = vmatpush.msra.mxu0 %v2057
    %v2059 = vand.u32 %v1870, 4294901760
    %2060 = vmatmul.f32.gmra.mxu0 %v2059
    %v2061 = vpop.f32.mrf.mxu0
    %v2062 = vadd.f32 %v2035, %v2061
    %v2063 = vand.u32 %v1873, 4294901760
    %2064 = vmatmul.f32.gmra.mxu0 %v2063
    %v2065 = vpop.f32.mrf.mxu0
    %v2066 = vadd.f32 %v2039, %v2065
    %2067 = vdwg.mxu0
    %v2068 = vadd.f32 %v1851, %v2062
    %v2069 = vadd.f32 %v1855, %v2066
    %s2070 = scalar_lea.vmem %s3, 48
    %v2071 = vld [vmem:[%s2070] sm:$0xff]
    %v2072 = vld [vmem:[%s2070 + $0x8] sm:$0xf]
    %2073 = vrot.lane.b32.xlu0 %v1437, 125
    %v2074 = vpop.permute.xlu0 %2073
    %2075 = vrot.lane.b32.xlu0 %v1441, 125
    %v2076 = vpop.permute.xlu0 %2075
    %vm2079 = vcmask 171008
    %v2080 = vsel %vm2079, %v2074, 0.0
    %v2081 = vsel %vm2079, %v2076, 0.0
    %v2083 = vsel %vm1459, %v2071, 0
    %v2086 = vsel %vm1459, %v2072, 0
    %v2089 = vsel %vm43, %v2081, 0
    %2091 = vmatpush.msra.mxu0 0.0
    %2092 = vmatpush.msra.mxu0 0.0
    %2093 = vmatpush.msra.mxu0 0.0
    %2094 = vmatpush.msra.mxu0 0.0
    %2095 = vmatpush.msra.mxu0 0.0
    %2096 = vmatpush.msra.mxu0 0.0
    %2097 = vmatpush.msra.mxu0 0.0
    %2098 = vmatpush.msra.mxu0 0.0
    %2099 = vmatpush.msra.mxu0 0.0
    %2100 = vmatpush.msra.mxu0 0.0
    %2101 = vmatpush.msra.mxu0 0.0
    %2102 = vmatpush.msra.mxu0 0.0
    %2103 = vmatpush.msra.mxu0 0.0
    %2104 = vmatpush.msra.mxu0 0.0
    %v2105 = vand.u32 %v2089, 4294901760
    %2106 = vmatpush.msra.mxu0 %v2105
    %v2107 = vand.u32 %v2080, 4294901760
    %2108 = vmatpush.msra.mxu0 %v2107
    %v2109 = vand.u32 %v2083, 4294901760
    %v2110 = vsub.f32 %v2083, %v2109
    %v2111 = vand.u32 %v2110, 4294901760
    %v2112 = vsub.f32 %v2110, %v2111
    %v2113 = vand.u32 %v2112, 4294901760
    %2114 = vmatmul.f32.gmra.mxu0 %v2113
    %v2115 = vpop.f32.mrf.mxu0
    %v2116 = vadd.f32 0.0, %v2115
    %v2117 = vand.u32 %v2086, 4294901760
    %v2118 = vsub.f32 %v2086, %v2117
    %v2119 = vand.u32 %v2118, 4294901760
    %v2120 = vsub.f32 %v2118, %v2119
    %v2121 = vand.u32 %v2120, 4294901760
    %2122 = vmatmul.f32.gmra.mxu0 %v2121
    %v2123 = vpop.f32.mrf.mxu0
    %v2124 = vadd.f32 0.0, %v2123
    %2125 = vdwg.mxu0
    %2126 = vmatpush.msra.mxu0 0.0
    %2127 = vmatpush.msra.mxu0 0.0
    %2128 = vmatpush.msra.mxu0 0.0
    %2129 = vmatpush.msra.mxu0 0.0
    %2130 = vmatpush.msra.mxu0 0.0
    %2131 = vmatpush.msra.mxu0 0.0
    %2132 = vmatpush.msra.mxu0 0.0
    %2133 = vmatpush.msra.mxu0 0.0
    %2134 = vmatpush.msra.mxu0 0.0
    %2135 = vmatpush.msra.mxu0 0.0
    %2136 = vmatpush.msra.mxu0 0.0
    %2137 = vmatpush.msra.mxu0 0.0
    %2138 = vmatpush.msra.mxu0 0.0
    %2139 = vmatpush.msra.mxu0 0.0
    %v2140 = vand.u32 %v2089, 4294901760
    %v2141 = vsub.f32 %v2089, %v2140
    %v2142 = vand.u32 %v2141, 4294901760
    %v2143 = vsub.f32 %v2141, %v2142
    %v2144 = vand.u32 %v2143, 4294901760
    %2145 = vmatpush.msra.mxu0 %v2144
    %v2146 = vand.u32 %v2080, 4294901760
    %v2147 = vsub.f32 %v2080, %v2146
    %v2148 = vand.u32 %v2147, 4294901760
    %v2149 = vsub.f32 %v2147, %v2148
    %v2150 = vand.u32 %v2149, 4294901760
    %2151 = vmatpush.msra.mxu0 %v2150
    %v2152 = vand.u32 %v2083, 4294901760
    %2153 = vmatmul.f32.gmra.mxu0 %v2152
    %v2154 = vpop.f32.mrf.mxu0
    %v2155 = vadd.f32 %v2116, %v2154
    %v2156 = vand.u32 %v2086, 4294901760
    %2157 = vmatmul.f32.gmra.mxu0 %v2156
    %v2158 = vpop.f32.mrf.mxu0
    %v2159 = vadd.f32 %v2124, %v2158
    %2160 = vdwg.mxu0
    %2161 = vmatpush.msra.mxu0 0.0
    %2162 = vmatpush.msra.mxu0 0.0
    %2163 = vmatpush.msra.mxu0 0.0
    %2164 = vmatpush.msra.mxu0 0.0
    %2165 = vmatpush.msra.mxu0 0.0
    %2166 = vmatpush.msra.mxu0 0.0
    %2167 = vmatpush.msra.mxu0 0.0
    %2168 = vmatpush.msra.mxu0 0.0
    %2169 = vmatpush.msra.mxu0 0.0
    %2170 = vmatpush.msra.mxu0 0.0
    %2171 = vmatpush.msra.mxu0 0.0
    %2172 = vmatpush.msra.mxu0 0.0
    %2173 = vmatpush.msra.mxu0 0.0
    %2174 = vmatpush.msra.mxu0 0.0
    %v2175 = vand.u32 %v2089, 4294901760
    %v2176 = vsub.f32 %v2089, %v2175
    %2177 = vmatpush.msra.mxu0 %v2176
    %v2178 = vand.u32 %v2080, 4294901760
    %v2179 = vsub.f32 %v2080, %v2178
    %2180 = vmatpush.msra.mxu0 %v2179
    %v2181 = vand.u32 %v2083, 4294901760
    %v2182 = vsub.f32 %v2083, %v2181
    %2183 = vmatmul.f32.gmra.mxu0 %v2182
    %v2184 = vpop.f32.mrf.mxu0
    %v2185 = vadd.f32 %v2155, %v2184
    %v2186 = vand.u32 %v2086, 4294901760
    %v2187 = vsub.f32 %v2086, %v2186
    %2188 = vmatmul.f32.gmra.mxu0 %v2187
    %v2189 = vpop.f32.mrf.mxu0
    %v2190 = vadd.f32 %v2159, %v2189
    %2191 = vdwg.mxu0
    %2192 = vmatpush.msra.mxu0 0.0
    %2193 = vmatpush.msra.mxu0 0.0
    %2194 = vmatpush.msra.mxu0 0.0
    %2195 = vmatpush.msra.mxu0 0.0
    %2196 = vmatpush.msra.mxu0 0.0
    %2197 = vmatpush.msra.mxu0 0.0
    %2198 = vmatpush.msra.mxu0 0.0
    %2199 = vmatpush.msra.mxu0 0.0
    %2200 = vmatpush.msra.mxu0 0.0
    %2201 = vmatpush.msra.mxu0 0.0
    %2202 = vmatpush.msra.mxu0 0.0
    %2203 = vmatpush.msra.mxu0 0.0
    %2204 = vmatpush.msra.mxu0 0.0
    %2205 = vmatpush.msra.mxu0 0.0
    %v2206 = vand.u32 %v2089, 4294901760
    %2207 = vmatpush.msra.mxu0 %v2206
    %v2208 = vand.u32 %v2080, 4294901760
    %2209 = vmatpush.msra.mxu0 %v2208
    %v2210 = vand.u32 %v2083, 4294901760
    %v2211 = vsub.f32 %v2083, %v2210
    %v2212 = vand.u32 %v2211, 4294901760
    %2213 = vmatmul.f32.gmra.mxu0 %v2212
    %v2214 = vpop.f32.mrf.mxu0
    %v2215 = vadd.f32 %v2185, %v2214
    %v2216 = vand.u32 %v2086, 4294901760
    %v2217 = vsub.f32 %v2086, %v2216
    %v2218 = vand.u32 %v2217, 4294901760
    %2219 = vmatmul.f32.gmra.mxu0 %v2218
    %v2220 = vpop.f32.mrf.mxu0
    %v2221 = vadd.f32 %v2190, %v2220
    %2222 = vdwg.mxu0
    %2223 = vmatpush.msra.mxu0 0.0
    %2224 = vmatpush.msra.mxu0 0.0
    %2225 = vmatpush.msra.mxu0 0.0
    %2226 = vmatpush.msra.mxu0 0.0
    %2227 = vmatpush.msra.mxu0 0.0
    %2228 = vmatpush.msra.mxu0 0.0
    %2229 = vmatpush.msra.mxu0 0.0
    %2230 = vmatpush.msra.mxu0 0.0
    %2231 = vmatpush.msra.mxu0 0.0
    %2232 = vmatpush.msra.mxu0 0.0
    %2233 = vmatpush.msra.mxu0 0.0
    %2234 = vmatpush.msra.mxu0 0.0
    %2235 = vmatpush.msra.mxu0 0.0
    %2236 = vmatpush.msra.mxu0 0.0
    %v2237 = vand.u32 %v2089, 4294901760
    %v2238 = vsub.f32 %v2089, %v2237
    %v2239 = vand.u32 %v2238, 4294901760
    %2240 = vmatpush.msra.mxu0 %v2239
    %v2241 = vand.u32 %v2080, 4294901760
    %v2242 = vsub.f32 %v2080, %v2241
    %v2243 = vand.u32 %v2242, 4294901760
    %2244 = vmatpush.msra.mxu0 %v2243
    %v2245 = vand.u32 %v2083, 4294901760
    %2246 = vmatmul.f32.gmra.mxu0 %v2245
    %v2247 = vpop.f32.mrf.mxu0
    %v2248 = vadd.f32 %v2215, %v2247
    %v2249 = vand.u32 %v2086, 4294901760
    %2250 = vmatmul.f32.gmra.mxu0 %v2249
    %v2251 = vpop.f32.mrf.mxu0
    %v2252 = vadd.f32 %v2221, %v2251
    %2253 = vdwg.mxu0
    %2254 = vmatpush.msra.mxu0 0.0
    %2255 = vmatpush.msra.mxu0 0.0
    %2256 = vmatpush.msra.mxu0 0.0
    %2257 = vmatpush.msra.mxu0 0.0
    %2258 = vmatpush.msra.mxu0 0.0
    %2259 = vmatpush.msra.mxu0 0.0
    %2260 = vmatpush.msra.mxu0 0.0
    %2261 = vmatpush.msra.mxu0 0.0
    %2262 = vmatpush.msra.mxu0 0.0
    %2263 = vmatpush.msra.mxu0 0.0
    %2264 = vmatpush.msra.mxu0 0.0
    %2265 = vmatpush.msra.mxu0 0.0
    %2266 = vmatpush.msra.mxu0 0.0
    %2267 = vmatpush.msra.mxu0 0.0
    %v2268 = vand.u32 %v2089, 4294901760
    %2269 = vmatpush.msra.mxu0 %v2268
    %v2270 = vand.u32 %v2080, 4294901760
    %2271 = vmatpush.msra.mxu0 %v2270
    %v2272 = vand.u32 %v2083, 4294901760
    %2273 = vmatmul.f32.gmra.mxu0 %v2272
    %v2274 = vpop.f32.mrf.mxu0
    %v2275 = vadd.f32 %v2248, %v2274
    %v2276 = vand.u32 %v2086, 4294901760
    %2277 = vmatmul.f32.gmra.mxu0 %v2276
    %v2278 = vpop.f32.mrf.mxu0
    %v2279 = vadd.f32 %v2252, %v2278
    %2280 = vdwg.mxu0
    %v2281 = vadd.f32 %v2068, %v2275
    %v2282 = vadd.f32 %v2069, %v2279
    %s2283 = scalar_lea.vmem %s3, 64
    %v2284 = vld [vmem:[%s2283] sm:$0xff]
    %v2285 = vld [vmem:[%s2283 + $0x8] sm:$0xf]
    %2286 = vrot.lane.b32.xlu0 %v1437, 124
    %v2287 = vpop.permute.xlu0 %2286
    %2288 = vrot.lane.b32.xlu0 %v1441, 124
    %v2289 = vpop.permute.xlu0 %2288
    %vm2292 = vcmask 162816
    %v2293 = vsel %vm2292, %v2287, 0.0
    %v2294 = vsel %vm2292, %v2289, 0.0
    %v2296 = vsel %vm1459, %v2284, 0
    %v2299 = vsel %vm1459, %v2285, 0
    %v2302 = vsel %vm43, %v2294, 0
    %2304 = vmatpush.msra.mxu0 0.0
    %2305 = vmatpush.msra.mxu0 0.0
    %2306 = vmatpush.msra.mxu0 0.0
    %2307 = vmatpush.msra.mxu0 0.0
    %2308 = vmatpush.msra.mxu0 0.0
    %2309 = vmatpush.msra.mxu0 0.0
    %2310 = vmatpush.msra.mxu0 0.0
    %2311 = vmatpush.msra.mxu0 0.0
    %2312 = vmatpush.msra.mxu0 0.0
    %2313 = vmatpush.msra.mxu0 0.0
    %2314 = vmatpush.msra.mxu0 0.0
    %2315 = vmatpush.msra.mxu0 0.0
    %2316 = vmatpush.msra.mxu0 0.0
    %2317 = vmatpush.msra.mxu0 0.0
    %v2318 = vand.u32 %v2302, 4294901760
    %2319 = vmatpush.msra.mxu0 %v2318
    %v2320 = vand.u32 %v2293, 4294901760
    %2321 = vmatpush.msra.mxu0 %v2320
    %v2322 = vand.u32 %v2296, 4294901760
    %v2323 = vsub.f32 %v2296, %v2322
    %v2324 = vand.u32 %v2323, 4294901760
    %v2325 = vsub.f32 %v2323, %v2324
    %v2326 = vand.u32 %v2325, 4294901760
    %2327 = vmatmul.f32.gmra.mxu0 %v2326
    %v2328 = vpop.f32.mrf.mxu0
    %v2329 = vadd.f32 0.0, %v2328
    %v2330 = vand.u32 %v2299, 4294901760
    %v2331 = vsub.f32 %v2299, %v2330
    %v2332 = vand.u32 %v2331, 4294901760
    %v2333 = vsub.f32 %v2331, %v2332
    %v2334 = vand.u32 %v2333, 4294901760
    %2335 = vmatmul.f32.gmra.mxu0 %v2334
    %v2336 = vpop.f32.mrf.mxu0
    %v2337 = vadd.f32 0.0, %v2336
    %2338 = vdwg.mxu0
    %2339 = vmatpush.msra.mxu0 0.0
    %2340 = vmatpush.msra.mxu0 0.0
    %2341 = vmatpush.msra.mxu0 0.0
    %2342 = vmatpush.msra.mxu0 0.0
    %2343 = vmatpush.msra.mxu0 0.0
    %2344 = vmatpush.msra.mxu0 0.0
    %2345 = vmatpush.msra.mxu0 0.0
    %2346 = vmatpush.msra.mxu0 0.0
    %2347 = vmatpush.msra.mxu0 0.0
    %2348 = vmatpush.msra.mxu0 0.0
    %2349 = vmatpush.msra.mxu0 0.0
    %2350 = vmatpush.msra.mxu0 0.0
    %2351 = vmatpush.msra.mxu0 0.0
    %2352 = vmatpush.msra.mxu0 0.0
    %v2353 = vand.u32 %v2302, 4294901760
    %v2354 = vsub.f32 %v2302, %v2353
    %v2355 = vand.u32 %v2354, 4294901760
    %v2356 = vsub.f32 %v2354, %v2355
    %v2357 = vand.u32 %v2356, 4294901760
    %2358 = vmatpush.msra.mxu0 %v2357
    %v2359 = vand.u32 %v2293, 4294901760
    %v2360 = vsub.f32 %v2293, %v2359
    %v2361 = vand.u32 %v2360, 4294901760
    %v2362 = vsub.f32 %v2360, %v2361
    %v2363 = vand.u32 %v2362, 4294901760
    %2364 = vmatpush.msra.mxu0 %v2363
    %v2365 = vand.u32 %v2296, 4294901760
    %2366 = vmatmul.f32.gmra.mxu0 %v2365
    %v2367 = vpop.f32.mrf.mxu0
    %v2368 = vadd.f32 %v2329, %v2367
    %v2369 = vand.u32 %v2299, 4294901760
    %2370 = vmatmul.f32.gmra.mxu0 %v2369
    %v2371 = vpop.f32.mrf.mxu0
    %v2372 = vadd.f32 %v2337, %v2371
    %2373 = vdwg.mxu0
    %2374 = vmatpush.msra.mxu0 0.0
    %2375 = vmatpush.msra.mxu0 0.0
    %2376 = vmatpush.msra.mxu0 0.0
    %2377 = vmatpush.msra.mxu0 0.0
    %2378 = vmatpush.msra.mxu0 0.0
    %2379 = vmatpush.msra.mxu0 0.0
    %2380 = vmatpush.msra.mxu0 0.0
    %2381 = vmatpush.msra.mxu0 0.0
    %2382 = vmatpush.msra.mxu0 0.0
    %2383 = vmatpush.msra.mxu0 0.0
    %2384 = vmatpush.msra.mxu0 0.0
    %2385 = vmatpush.msra.mxu0 0.0
    %2386 = vmatpush.msra.mxu0 0.0
    %2387 = vmatpush.msra.mxu0 0.0
    %v2388 = vand.u32 %v2302, 4294901760
    %v2389 = vsub.f32 %v2302, %v2388
    %2390 = vmatpush.msra.mxu0 %v2389
    %v2391 = vand.u32 %v2293, 4294901760
    %v2392 = vsub.f32 %v2293, %v2391
    %2393 = vmatpush.msra.mxu0 %v2392
    %v2394 = vand.u32 %v2296, 4294901760
    %v2395 = vsub.f32 %v2296, %v2394
    %2396 = vmatmul.f32.gmra.mxu0 %v2395
    %v2397 = vpop.f32.mrf.mxu0
    %v2398 = vadd.f32 %v2368, %v2397
    %v2399 = vand.u32 %v2299, 4294901760
    %v2400 = vsub.f32 %v2299, %v2399
    %2401 = vmatmul.f32.gmra.mxu0 %v2400
    %v2402 = vpop.f32.mrf.mxu0
    %v2403 = vadd.f32 %v2372, %v2402
    %2404 = vdwg.mxu0
    %2405 = vmatpush.msra.mxu0 0.0
    %2406 = vmatpush.msra.mxu0 0.0
    %2407 = vmatpush.msra.mxu0 0.0
    %2408 = vmatpush.msra.mxu0 0.0
    %2409 = vmatpush.msra.mxu0 0.0
    %2410 = vmatpush.msra.mxu0 0.0
    %2411 = vmatpush.msra.mxu0 0.0
    %2412 = vmatpush.msra.mxu0 0.0
    %2413 = vmatpush.msra.mxu0 0.0
    %2414 = vmatpush.msra.mxu0 0.0
    %2415 = vmatpush.msra.mxu0 0.0
    %2416 = vmatpush.msra.mxu0 0.0
    %2417 = vmatpush.msra.mxu0 0.0
    %2418 = vmatpush.msra.mxu0 0.0
    %v2419 = vand.u32 %v2302, 4294901760
    %2420 = vmatpush.msra.mxu0 %v2419
    %v2421 = vand.u32 %v2293, 4294901760
    %2422 = vmatpush.msra.mxu0 %v2421
    %v2423 = vand.u32 %v2296, 4294901760
    %v2424 = vsub.f32 %v2296, %v2423
    %v2425 = vand.u32 %v2424, 4294901760
    %2426 = vmatmul.f32.gmra.mxu0 %v2425
    %v2427 = vpop.f32.mrf.mxu0
    %v2428 = vadd.f32 %v2398, %v2427
    %v2429 = vand.u32 %v2299, 4294901760
    %v2430 = vsub.f32 %v2299, %v2429
    %v2431 = vand.u32 %v2430, 4294901760
    %2432 = vmatmul.f32.gmra.mxu0 %v2431
    %v2433 = vpop.f32.mrf.mxu0
    %v2434 = vadd.f32 %v2403, %v2433
    %2435 = vdwg.mxu0
    %2436 = vmatpush.msra.mxu0 0.0
    %2437 = vmatpush.msra.mxu0 0.0
    %2438 = vmatpush.msra.mxu0 0.0
    %2439 = vmatpush.msra.mxu0 0.0
    %2440 = vmatpush.msra.mxu0 0.0
    %2441 = vmatpush.msra.mxu0 0.0
    %2442 = vmatpush.msra.mxu0 0.0
    %2443 = vmatpush.msra.mxu0 0.0
    %2444 = vmatpush.msra.mxu0 0.0
    %2445 = vmatpush.msra.mxu0 0.0
    %2446 = vmatpush.msra.mxu0 0.0
    %2447 = vmatpush.msra.mxu0 0.0
    %2448 = vmatpush.msra.mxu0 0.0
    %2449 = vmatpush.msra.mxu0 0.0
    %v2450 = vand.u32 %v2302, 4294901760
    %v2451 = vsub.f32 %v2302, %v2450
    %v2452 = vand.u32 %v2451, 4294901760
    %2453 = vmatpush.msra.mxu0 %v2452
    %v2454 = vand.u32 %v2293, 4294901760
    %v2455 = vsub.f32 %v2293, %v2454
    %v2456 = vand.u32 %v2455, 4294901760
    %2457 = vmatpush.msra.mxu0 %v2456
    %v2458 = vand.u32 %v2296, 4294901760
    %2459 = vmatmul.f32.gmra.mxu0 %v2458
    %v2460 = vpop.f32.mrf.mxu0
    %v2461 = vadd.f32 %v2428, %v2460
    %v2462 = vand.u32 %v2299, 4294901760
    %2463 = vmatmul.f32.gmra.mxu0 %v2462
    %v2464 = vpop.f32.mrf.mxu0
    %v2465 = vadd.f32 %v2434, %v2464
    %2466 = vdwg.mxu0
    %2467 = vmatpush.msra.mxu0 0.0
    %2468 = vmatpush.msra.mxu0 0.0
    %2469 = vmatpush.msra.mxu0 0.0
    %2470 = vmatpush.msra.mxu0 0.0
    %2471 = vmatpush.msra.mxu0 0.0
    %2472 = vmatpush.msra.mxu0 0.0
    %2473 = vmatpush.msra.mxu0 0.0
    %2474 = vmatpush.msra.mxu0 0.0
    %2475 = vmatpush.msra.mxu0 0.0
    %2476 = vmatpush.msra.mxu0 0.0
    %2477 = vmatpush.msra.mxu0 0.0
    %2478 = vmatpush.msra.mxu0 0.0
    %2479 = vmatpush.msra.mxu0 0.0
    %2480 = vmatpush.msra.mxu0 0.0
    %v2481 = vand.u32 %v2302, 4294901760
    %2482 = vmatpush.msra.mxu0 %v2481
    %v2483 = vand.u32 %v2293, 4294901760
    %2484 = vmatpush.msra.mxu0 %v2483
    %v2485 = vand.u32 %v2296, 4294901760
    %2486 = vmatmul.f32.gmra.mxu0 %v2485
    %v2487 = vpop.f32.mrf.mxu0
    %v2488 = vadd.f32 %v2461, %v2487
    %v2489 = vand.u32 %v2299, 4294901760
    %2490 = vmatmul.f32.gmra.mxu0 %v2489
    %v2491 = vpop.f32.mrf.mxu0
    %v2492 = vadd.f32 %v2465, %v2491
    %2493 = vdwg.mxu0
    %v2494 = vadd.f32 %v2281, %v2488
    %v2495 = vadd.f32 %v2282, %v2492
    %v2496 = vld [vmem:[%s4] sm:$0xff]
    %v2497 = vld [vmem:[%s4 + $0x8] sm:$0xf]
    %2499 = vset.pattern.permute.xlu0 0
    %2500 = vperm.xlu0 %2499, %v2496
    %v2501 = vpop.permute.xlu0 %2500
    %2504 = vset.pattern.permute.xlu0 0
    %2505 = vperm.xlu0 %2504, %v2497
    %v2506 = vpop.permute.xlu0 %2505
    %v2508 = vadd.f32 %v2494, %v2501
    %v2509 = vadd.f32 %v2495, %v2506
    %vm2510 = vcmask 195584
    %2511 = vst.msk [vmem:[#allocation2] sm:$0xff] %vm2510, %v2508
    %vm2512 = vcmask 191488
    %2513 = vst.msk [vmem:[#allocation2 + $0x8] sm:$0xf] %vm2512, %v2509
    // Predicated region
    $region26: #{tpu_custom_call.1} parent=1 // pred_check
      _
    $region27: #{tpu_custom_call.1} parent=1 // pred_check_branch
      %2515 = sbr.rel (0) target = $region29
    $region28: #{tpu_custom_call.1} parent=1 // pred_region
      %2517 = vsyncadd [#allocation3], 0
      %s2518 = sshll.u32 [#allocation2], 4
      %s2519 = int_to_ptr.vmem [resolvable:$true] %s2518
      %s2520 = sshll.u32 %s6, 4
      %s2521 = int_to_ptr.hbm [resolvable:$true] %s2520
      %2526 = dma.vmem_to_hbm [thread:$0]  %s2519, 256, %s2521, [#allocation3], 128, 128, 8
    $region29: #{tpu_custom_call.1} parent=1 // pred_fallthru
      _
    // Predicated region
    $region30: #{tpu_custom_call.1} parent=1 // pred_check
      _
    $region31: #{tpu_custom_call.1} parent=1 // pred_check_branch
      %2528 = sbr.rel (0) target = $region33
    $region32: #{tpu_custom_call.1} parent=1 // pred_region
      %2530 = dma.done [#allocation3], 256
    $region33: #{tpu_custom_call.1} parent=1 // pred_fallthru
      _
    %2531 = vsyncpa [#allocation3], 1

</llo_original>
